<compile_context>
chip_gen: v6e
topology: v6e:2x2x1
jax: 0.10.0
libtpu: 0.0.40
codegen_flags: <defaults>
</compile_context>

<pallas_src>
import math

import numpy as np
import jax
import jax.numpy as jnp
from jax import lax
from jax.experimental import pallas as pl
from jax.experimental.pallas import tpu as pltpu

# ----------------- DeepConvNet(__init__) arguments -----------------
WIDTH = 16                 # 1-D signal length L
NFEATURES = 4              # input channels
FILTER_LIST = [8, 16]
FILTSIZE_LIST = [3, 3]
PADDING_LIST = [1, 1]
POOLSIZE_LIST = [2, 2]
N_LIN1 = 32
N_LIN2 = 16
NOUTPUTS = 1
BATCH = 2

# ----------------- derived static sizes -----------------
PAD0, PAD1 = PADDING_LIST
K1, K2 = FILTSIZE_LIST
O1, O2 = FILTER_LIST
P1, P2 = POOLSIZE_LIST
SEG0 = WIDTH + 2 * PAD0          # per-batch padded length seen by conv1 (18)
L1 = SEG0 - K1 + 1               # conv1 output length per batch (16)
L1P = L1 // P1                   # after pool1 (8)
SEG1 = L1P + 2 * PAD1            # per-batch padded length seen by conv2 (10)
L2 = SEG1 - K2 + 1               # conv2 output length per batch (8)
L2P = L2 // P2                   # after pool2 (4)
FLAT_DIM = O2 * L2P              # 64 == int(WIDTH / prod(pools) * FILTER_LIST[1])

LANE = 128                       # all rolled activations are exactly one vreg wide
XROWS = 8                        # input channel rows padded to one sublane tile


def _a8(n):                      # round rows up to a sublane-tile multiple
    return -(-n // 8) * 8


# ----------------- packed-parameter row layout (single VMEM buffer) -----------------
R_W1 = 0                          # (K1*O1, NFEATURES)  conv1 taps, tap-major
R_B1 = R_W1 + _a8(K1 * O1)        # 24  (O1, 1)
R_S1 = R_B1 + _a8(O1)             # 32  (S1_ROWS, LANE) pool1 compact/re-pad selection
S1_ROWS = _a8(BATCH * SEG0)       # 40
R_W2 = R_S1 + S1_ROWS             # 72  (K2*O2, O1)      conv2 taps, tap-major
R_B2 = R_W2 + _a8(K2 * O2)        # 120 (O2, 1)
R_S2 = R_B2 + _a8(O2)             # 136 (S2_ROWS, L2P*B) pool2 -> l-major selection
S2_ROWS = _a8(BATCH * SEG1)       # 24
R_FC1W = R_S2 + S2_ROWS           # 160 (L2P*N_LIN1, O2) fc1 split per position l
R_FC1B = R_FC1W + L2P * N_LIN1    # 288 (N_LIN1, 1)
R_FC2W = R_FC1B + _a8(N_LIN1)     # 320 (N_LIN2, N_LIN1)
R_FC2B = R_FC2W + _a8(N_LIN2)     # 336 (N_LIN2, 1)
R_FC3W = R_FC2B + _a8(N_LIN2)     # 352 (N_LIN2, 1)
R_FC3B = R_FC3W + _a8(N_LIN2)     # 368 (1, 1)
TOTAL_ROWS = R_FC3B + 8           # 376  -> packed buffer (376, 128) f32 ~ 188 KiB


# ===================== Pallas kernel =====================

def _deep_conv_net_kernel(x_ref, p_ref, out_ref):
    f32 = jnp.float32

    def lshift(v, k):
        # v shifted left by k lanes: result[:, j] = v[:, (j + k) % LANE].
        # Every rolled array is exactly LANE wide -> one XLU vreg rotate.
        return v if k == 0 else pltpu.roll(v, shift=LANE - k, axis=1)

    x = x_ref[...]                                                     # (8, 128)

    # ---- conv1 + bias + ReLU: K1 accumulated MXU dots over lane-rolled input ----
    h1 = jnp.dot(p_ref[R_W1:R_W1 + O1, 0:XROWS], x, preferred_element_type=f32)
    for k in range(1, K1):
        h1 = h1 + jnp.dot(p_ref[R_W1 + k * O1:R_W1 + (k + 1) * O1, 0:XROWS],
                          lshift(x, k), preferred_element_type=f32)
    h1 = jnp.maximum(h1 + p_ref[R_B1:R_B1 + O1, 0:1], 0.0)             # (O1, 128)

    # ---- pool1: XLU roll + VPU max, then compact + re-pad via one selection dot ----
    m1 = h1
    for s in range(1, P1):
        m1 = jnp.maximum(m1, lshift(h1, s))
    p1 = jnp.dot(m1[:, :S1_ROWS], p_ref[R_S1:R_S1 + S1_ROWS, :],
                 preferred_element_type=f32)                           # (O1, 128)

    # ---- conv2 + bias + ReLU ----
    h2 = jnp.dot(p_ref[R_W2:R_W2 + O2, 0:O1], p1, preferred_element_type=f32)
    for k in range(1, K2):
        h2 = h2 + jnp.dot(p_ref[R_W2 + k * O2:R_W2 + (k + 1) * O2, 0:O1],
                          lshift(p1, k), preferred_element_type=f32)
    h2 = jnp.maximum(h2 + p_ref[R_B2:R_B2 + O2, 0:1], 0.0)             # (O2, 128)

    # ---- pool2: roll+max, then compact to l-major (O2, L2P*B) ----
    m2 = h2
    for s in range(1, P2):
        m2 = jnp.maximum(m2, lshift(h2, s))
    pool2 = jnp.dot(m2[:, :S2_ROWS], p_ref[R_S2:R_S2 + S2_ROWS, 0:L2P * BATCH],
                    preferred_element_type=f32)                        # (O2, L2P*B)

    # TODO(synk): nn.Dropout(0.8) is identity in eval mode; training-mode
    # stochastic masking is not modeled here.

    # ---- fc1: channel-major flatten folded into L2P accumulated MXU dots ----
    hfc1 = jnp.dot(p_ref[R_FC1W:R_FC1W + N_LIN1, 0:O2], pool2[:, 0:BATCH],
                   preferred_element_type=f32)
    for l in range(1, L2P):
        hfc1 = hfc1 + jnp.dot(
            p_ref[R_FC1W + l * N_LIN1:R_FC1W + (l + 1) * N_LIN1, 0:O2],
            pool2[:, l * BATCH:(l + 1) * BATCH], preferred_element_type=f32)
    hfc1 = jnp.maximum(hfc1 + p_ref[R_FC1B:R_FC1B + N_LIN1, 0:1], 0.0)  # (N_LIN1, B)

    # ---- fc2 ----
    hfc2 = jnp.maximum(
        jnp.dot(p_ref[R_FC2W:R_FC2W + N_LIN2, 0:N_LIN1], hfc1,
                preferred_element_type=f32)
        + p_ref[R_FC2B:R_FC2B + N_LIN2, 0:1], 0.0)                     # (N_LIN2, B)

    # ---- fc3 (N_LIN2 -> 1): broadcast-mul + sublane reduce (VPU/XLU) ----
    out_ref[...] = (jnp.sum(hfc2 * p_ref[R_FC3W:R_FC3W + N_LIN2, 0:1],
                            axis=0, keepdims=True)
                    + p_ref[R_FC3B:R_FC3B + 1, 0:1])                   # (1, B)


# ===================== host-side packing (done once) =====================

def prepare_params(params):
    """Pack every weight/bias/selection matrix into ONE (TOTAL_ROWS, LANE) buffer."""
    # Static sanity checks (see correctness_concerns in the review): the packed
    # conv/pool trick is only valid under these conditions.
    assert NOUTPUTS == 1
    assert L1 % P1 == 0 and L2 % P2 == 0
    assert BATCH * SEG0 <= LANE and BATCH * SEG1 <= LANE
    assert NFEATURES <= XROWS
    assert P1 * (L1P - 1) + (P1 - 1) <= L1 - 1      # pool1 windows stay inside a batch
    assert P2 * (L2P - 1) + (P2 - 1) <= L2 - 1      # pool2 windows stay inside a batch
    assert params['fc1_w'].shape == (N_LIN1, FLAT_DIM)

    P = np.zeros((TOTAL_ROWS, LANE), np.float32)

    # conv1 taps: W1_k = conv1_w[:, :, k]  (O1, NFEATURES), tap-major rows.
    w1 = np.asarray(params['conv1_w'], np.float32)
    for k in range(K1):
        P[R_W1 + k * O1:R_W1 + (k + 1) * O1, :NFEATURES] = w1[:, :, k]
    P[R_B1:R_B1 + O1, 0] = np.asarray(params['conv1_b'], np.float32)

    # pool1 selection: pooled value (b, jp) sits at conv1 column b*SEG0 + P1*jp;
    # place it at the zero-padded conv2-input column b*SEG1 + PAD1 + jp.
    for b in range(BATCH):
        for jp in range(L1P):
            P[R_S1 + b * SEG0 + P1 * jp, b * SEG1 + PAD1 + jp] = 1.0

    # conv2 taps: W2_k = conv2_w[:, :, k]  (O2, O1).
    w2 = np.asarray(params['conv2_w'], np.float32)
    for k in range(K2):
        P[R_W2 + k * O2:R_W2 + (k + 1) * O2, :O1] = w2[:, :, k]
    P[R_B2:R_B2 + O2, 0] = np.asarray(params['conv2_b'], np.float32)

    # pool2 selection: pooled value (b, l) sits at conv2 column b*SEG1 + P2*l;
    # place it at column l*BATCH + b (l-major, so fc1 folds the flatten).
    for b in range(BATCH):
        for l in range(L2P):
            P[R_S2 + b * SEG1 + P2 * l, l * BATCH + b] = 1.0

    # fc1: PyTorch flatten index is c*L2P + l -> per-position blocks (N_LIN1, O2).
    fc1w = np.asarray(params['fc1_w'], np.float32).reshape(N_LIN1, O2, L2P)
    for l in range(L2P):
        P[R_FC1W + l * N_LIN1:R_FC1W + (l + 1) * N_LIN1, :O2] = fc1w[:, :, l]
    P[R_FC1B:R_FC1B + N_LIN1, 0] = np.asarray(params['fc1_b'], np.float32)

    P[R_FC2W:R_FC2W + N_LIN2, :N_LIN1] = np.asarray(params['fc2_w'], np.float32)
    P[R_FC2B:R_FC2B + N_LIN2, 0] = np.asarray(params['fc2_b'], np.float32)
    # (NOUTPUTS, N_LIN2) -> column; valid because NOUTPUTS == 1.
    P[R_FC3W:R_FC3W + N_LIN2, 0] = np.asarray(params['fc3_w'], np.float32)[0]
    P[R_FC3B, 0] = float(np.asarray(params['fc3_b'], np.float32)[0])

    return jnp.asarray(P)


_VMEM = pl.BlockSpec(memory_space=pltpu.MemorySpace.VMEM)


@jax.jit
def deep_conv_net_forward(x, packed):
    assert x.shape == (BATCH, NFEATURES, WIDTH)
    # Host-side (XLA) zero-pad + batch-pack so the kernel starts with a matmul:
    # xcat[c, b*SEG0 + p] = padded signal; padded to one (8, 128) vreg slab.
    xp = jnp.pad(x.astype(jnp.float32), ((0, 0), (0, 0), (PAD0, PAD0)))
    xcat = jnp.transpose(xp, (1, 0, 2)).reshape(NFEATURES, BATCH * SEG0)
    xcat = jnp.pad(xcat, ((0, XROWS - NFEATURES), (0, LANE - BATCH * SEG0)))

    out = pl.pallas_call(
        _deep_conv_net_kernel,
        out_shape=jax.ShapeDtypeStruct((NOUTPUTS, BATCH), jnp.float32),
        in_specs=[_VMEM, _VMEM],
        out_specs=_VMEM,
    )(xcat, packed)
    return out[0]                      # (B,), matches .squeeze(-1) for NOUTPUTS == 1


# ===================== params + pure-JAX reference =====================

def init_params(key):
    def unif(k, shape, fan_in):
        bound = 1.0 / math.sqrt(fan_in)
        return jax.random.uniform(k, shape, jnp.float32, -bound, bound)

    keys = jax.random.split(key, 10)
    dim = int(WIDTH / math.prod(POOLSIZE_LIST) * FILTER_LIST[1])
    return {
        'conv1_w': unif(keys[0], (FILTER_LIST[0], NFEATURES, FILTSIZE_LIST[0]),
                        NFEATURES * FILTSIZE_LIST[0]),
        'conv1_b': unif(keys[1], (FILTER_LIST[0],), NFEATURES * FILTSIZE_LIST[0]),
        'conv2_w': unif(keys[2], (FILTER_LIST[1], FILTER_LIST[0], FILTSIZE_LIST[1]),
                        FILTER_LIST[0] * FILTSIZE_LIST[1]),
        'conv2_b': unif(keys[3], (FILTER_LIST[1],), FILTER_LIST[0] * FILTSIZE_LIST[1]),
        'fc1_w': unif(keys[4], (N_LIN1, dim), dim),
        'fc1_b': unif(keys[5], (N_LIN1,), dim),
        'fc2_w': unif(keys[6], (N_LIN2, N_LIN1), N_LIN1),
        'fc2_b': unif(keys[7], (N_LIN2,), N_LIN1),
        'fc3_w': unif(keys[8], (NOUTPUTS, N_LIN2), N_LIN2),
        'fc3_b': unif(keys[9], (NOUTPUTS,), N_LIN2),
    }


def reference_forward(x, params):
    h = x
    convs = [(params['conv1_w'], params['conv1_b'], PADDING_LIST[0], POOLSIZE_LIST[0]),
             (params['conv2_w'], params['conv2_b'], PADDING_LIST[1], POOLSIZE_LIST[1])]
    for w, b, pad, pool in convs:
        h = lax.conv_general_dilated(h, w, window_strides=(1,),
                                     padding=[(pad, pad)],
                                     dimension_numbers=('NCH', 'OIH', 'NCH'))
        h = jnp.maximum(h + b[None, :, None], 0.0)
        h = lax.reduce_window(h, -jnp.inf, lax.max,
                              (1, 1, pool), (1, 1, pool), 'VALID')
    flat = h.reshape(h.shape[0], -1)
    h = jnp.maximum(flat @ params['fc1_w'].T + params['fc1_b'], 0.0)
    h = jnp.maximum(h @ params['fc2_w'].T + params['fc2_b'], 0.0)
    out = h @ params['fc3_w'].T + params['fc3_b']
    return jnp.squeeze(out, -1)


if __name__ == "__main__":
    key = jax.random.PRNGKey(0)
    pkey, xkey = jax.random.split(key)
    params = init_params(pkey)
    packed = prepare_params(params)        # static packing, done once at init
    x = jax.random.normal(xkey, (BATCH, NFEATURES, WIDTH), jnp.float32)

    out = jax.block_until_ready(deep_conv_net_forward(x, packed))
    ref = jax.block_until_ready(reference_forward(x, params))

    assert out.shape == (BATCH,), out.shape
    if not jnp.allclose(out, ref, rtol=1e-2, atol=1e-2):
        raise AssertionError(f"mismatch: pallas={out} ref={ref}")
    print("KERNEL_OK")
</pallas_src>

<mosaic_0001>
module attributes {stable_mosaic.version = 11 : i64} {
  func.func @_deep_conv_net_kernel(%arg0: memref<8x128xf32, #tpu.memory_space<vmem>>, %arg1: memref<376x128xf32, #tpu.memory_space<vmem>>, %arg2: memref<1x2xf32, #tpu.memory_space<vmem>>) attributes {dimension_semantics = [], scalar_prefetch = 0 : i64, scratch_operands = 0 : i64, tpu.core_type = #tpu.core_type<tc>} {
    %c0 = arith.constant 0 : index
    %c0_0 = arith.constant 0 : index
    %0 = vector.load %arg0[%c0, %c0_0] : memref<8x128xf32, #tpu.memory_space<vmem>>, vector<8x128xf32>
    %c0_1 = arith.constant 0 : index
    %c0_2 = arith.constant 0 : index
    %1 = vector.load %arg1[%c0_1, %c0_2] : memref<376x128xf32, #tpu.memory_space<vmem>>, vector<8x8xf32>
    %cst = arith.constant dense<0.000000e+00> : vector<8x128xf32>
    %2 = tpu.matmul %1, %0, %cst {dimension_numbers = #tpu.dot_dimension_numbers<[1], [0], [0], [1], [0, 0, 1, 1], [], []>} : vector<8x8xf32>, vector<8x128xf32>, vector<8x128xf32> -> vector<8x128xf32>
    %c8 = arith.constant 8 : index
    %c0_3 = arith.constant 0 : index
    %3 = vector.load %arg1[%c8, %c0_3] : memref<376x128xf32, #tpu.memory_space<vmem>>, vector<8x8xf32>
    %c127_i32 = arith.constant 127 : i32
    %4 = tpu.dynamic_rotate %0 by %c127_i32 dim 1 : vector<8x128xf32>, i32 -> vector<8x128xf32>
    %cst_4 = arith.constant dense<0.000000e+00> : vector<8x128xf32>
    %5 = tpu.matmul %3, %4, %cst_4 {dimension_numbers = #tpu.dot_dimension_numbers<[1], [0], [0], [1], [0, 0, 1, 1], [], []>} : vector<8x8xf32>, vector<8x128xf32>, vector<8x128xf32> -> vector<8x128xf32>
    %6 = arith.addf %2, %5 : vector<8x128xf32>
    %c16 = arith.constant 16 : index
    %c0_5 = arith.constant 0 : index
    %7 = vector.load %arg1[%c16, %c0_5] : memref<376x128xf32, #tpu.memory_space<vmem>>, vector<8x8xf32>
    %c126_i32 = arith.constant 126 : i32
    %8 = tpu.dynamic_rotate %0 by %c126_i32 dim 1 : vector<8x128xf32>, i32 -> vector<8x128xf32>
    %cst_6 = arith.constant dense<0.000000e+00> : vector<8x128xf32>
    %9 = tpu.matmul %7, %8, %cst_6 {dimension_numbers = #tpu.dot_dimension_numbers<[1], [0], [0], [1], [0, 0, 1, 1], [], []>} : vector<8x8xf32>, vector<8x128xf32>, vector<8x128xf32> -> vector<8x128xf32>
    %10 = arith.addf %6, %9 : vector<8x128xf32>
    %c24 = arith.constant 24 : index
    %c0_7 = arith.constant 0 : index
    %11 = vector.load %arg1[%c24, %c0_7] : memref<376x128xf32, #tpu.memory_space<vmem>>, vector<8x1xf32>
    %12 = vector.broadcast %11 : vector<8x1xf32> to vector<8x128xf32>
    %13 = arith.addf %10, %12 : vector<8x128xf32>
    %cst_8 = arith.constant 0.000000e+00 : f32
    %14 = vector.broadcast %cst_8 : f32 to vector<8x128xf32>
    %15 = arith.maximumf %13, %14 : vector<8x128xf32>
    %c127_i32_9 = arith.constant 127 : i32
    %16 = tpu.dynamic_rotate %15 by %c127_i32_9 dim 1 : vector<8x128xf32>, i32 -> vector<8x128xf32>
    %17 = arith.maximumf %15, %16 : vector<8x128xf32>
    %18 = vector.extract_strided_slice %17 {offsets = [0, 0], sizes = [8, 40], strides = [1, 1]} : vector<8x128xf32> to vector<8x40xf32>
    %c32 = arith.constant 32 : index
    %c0_10 = arith.constant 0 : index
    %19 = vector.load %arg1[%c32, %c0_10] : memref<376x128xf32, #tpu.memory_space<vmem>>, vector<40x128xf32>
    %cst_11 = arith.constant dense<0.000000e+00> : vector<8x128xf32>
    %20 = tpu.matmul %18, %19, %cst_11 {dimension_numbers = #tpu.dot_dimension_numbers<[1], [0], [0], [1], [0, 0, 1, 1], [], []>} : vector<8x40xf32>, vector<40x128xf32>, vector<8x128xf32> -> vector<8x128xf32>
    %c72 = arith.constant 72 : index
    %c0_12 = arith.constant 0 : index
    %21 = vector.load %arg1[%c72, %c0_12] : memref<376x128xf32, #tpu.memory_space<vmem>>, vector<16x8xf32>
    %cst_13 = arith.constant dense<0.000000e+00> : vector<16x128xf32>
    %22 = tpu.matmul %21, %20, %cst_13 {dimension_numbers = #tpu.dot_dimension_numbers<[1], [0], [0], [1], [0, 0, 1, 1], [], []>} : vector<16x8xf32>, vector<8x128xf32>, vector<16x128xf32> -> vector<16x128xf32>
    %c88 = arith.constant 88 : index
    %c0_14 = arith.constant 0 : index
    %23 = vector.load %arg1[%c88, %c0_14] : memref<376x128xf32, #tpu.memory_space<vmem>>, vector<16x8xf32>
    %c127_i32_15 = arith.constant 127 : i32
    %24 = tpu.dynamic_rotate %20 by %c127_i32_15 dim 1 : vector<8x128xf32>, i32 -> vector<8x128xf32>
    %cst_16 = arith.constant dense<0.000000e+00> : vector<16x128xf32>
    %25 = tpu.matmul %23, %24, %cst_16 {dimension_numbers = #tpu.dot_dimension_numbers<[1], [0], [0], [1], [0, 0, 1, 1], [], []>} : vector<16x8xf32>, vector<8x128xf32>, vector<16x128xf32> -> vector<16x128xf32>
    %26 = arith.addf %22, %25 : vector<16x128xf32>
    %c104 = arith.constant 104 : index
    %c0_17 = arith.constant 0 : index
    %27 = vector.load %arg1[%c104, %c0_17] : memref<376x128xf32, #tpu.memory_space<vmem>>, vector<16x8xf32>
    %c126_i32_18 = arith.constant 126 : i32
    %28 = tpu.dynamic_rotate %20 by %c126_i32_18 dim 1 : vector<8x128xf32>, i32 -> vector<8x128xf32>
    %cst_19 = arith.constant dense<0.000000e+00> : vector<16x128xf32>
    %29 = tpu.matmul %27, %28, %cst_19 {dimension_numbers = #tpu.dot_dimension_numbers<[1], [0], [0], [1], [0, 0, 1, 1], [], []>} : vector<16x8xf32>, vector<8x128xf32>, vector<16x128xf32> -> vector<16x128xf32>
    %30 = arith.addf %26, %29 : vector<16x128xf32>
    %c120 = arith.constant 120 : index
    %c0_20 = arith.constant 0 : index
    %31 = vector.load %arg1[%c120, %c0_20] : memref<376x128xf32, #tpu.memory_space<vmem>>, vector<16x1xf32>
    %32 = vector.broadcast %31 : vector<16x1xf32> to vector<16x128xf32>
    %33 = arith.addf %30, %32 : vector<16x128xf32>
    %cst_21 = arith.constant 0.000000e+00 : f32
    %34 = vector.broadcast %cst_21 : f32 to vector<16x128xf32>
    %35 = arith.maximumf %33, %34 : vector<16x128xf32>
    %c127_i32_22 = arith.constant 127 : i32
    %36 = tpu.dynamic_rotate %35 by %c127_i32_22 dim 1 : vector<16x128xf32>, i32 -> vector<16x128xf32>
    %37 = arith.maximumf %35, %36 : vector<16x128xf32>
    %38 = vector.extract_strided_slice %37 {offsets = [0, 0], sizes = [16, 24], strides = [1, 1]} : vector<16x128xf32> to vector<16x24xf32>
    %c136 = arith.constant 136 : index
    %c0_23 = arith.constant 0 : index
    %39 = vector.load %arg1[%c136, %c0_23] : memref<376x128xf32, #tpu.memory_space<vmem>>, vector<24x8xf32>
    %cst_24 = arith.constant dense<0.000000e+00> : vector<16x8xf32>
    %40 = tpu.matmul %38, %39, %cst_24 {dimension_numbers = #tpu.dot_dimension_numbers<[1], [0], [0], [1], [0, 0, 1, 1], [], []>} : vector<16x24xf32>, vector<24x8xf32>, vector<16x8xf32> -> vector<16x8xf32>
    %c160 = arith.constant 160 : index
    %c0_25 = arith.constant 0 : index
    %41 = vector.load %arg1[%c160, %c0_25] : memref<376x128xf32, #tpu.memory_space<vmem>>, vector<32x16xf32>
    %42 = vector.extract_strided_slice %40 {offsets = [0, 0], sizes = [16, 2], strides = [1, 1]} : vector<16x8xf32> to vector<16x2xf32>
    %cst_26 = arith.constant dense<0.000000e+00> : vector<32x2xf32>
    %43 = tpu.matmul %41, %42, %cst_26 {dimension_numbers = #tpu.dot_dimension_numbers<[1], [0], [0], [1], [0, 0, 1, 1], [], []>} : vector<32x16xf32>, vector<16x2xf32>, vector<32x2xf32> -> vector<32x2xf32>
    %c192 = arith.constant 192 : index
    %c0_27 = arith.constant 0 : index
    %44 = vector.load %arg1[%c192, %c0_27] : memref<376x128xf32, #tpu.memory_space<vmem>>, vector<32x16xf32>
    %45 = vector.extract_strided_slice %40 {offsets = [0, 2], sizes = [16, 2], strides = [1, 1]} : vector<16x8xf32> to vector<16x2xf32>
    %cst_28 = arith.constant dense<0.000000e+00> : vector<32x2xf32>
    %46 = tpu.matmul %44, %45, %cst_28 {dimension_numbers = #tpu.dot_dimension_numbers<[1], [0], [0], [1], [0, 0, 1, 1], [], []>} : vector<32x16xf32>, vector<16x2xf32>, vector<32x2xf32> -> vector<32x2xf32>
    %47 = arith.addf %43, %46 : vector<32x2xf32>
    %c224 = arith.constant 224 : index
    %c0_29 = arith.constant 0 : index
    %48 = vector.load %arg1[%c224, %c0_29] : memref<376x128xf32, #tpu.memory_space<vmem>>, vector<32x16xf32>
    %49 = vector.extract_strided_slice %40 {offsets = [0, 4], sizes = [16, 2], strides = [1, 1]} : vector<16x8xf32> to vector<16x2xf32>
    %cst_30 = arith.constant dense<0.000000e+00> : vector<32x2xf32>
    %50 = tpu.matmul %48, %49, %cst_30 {dimension_numbers = #tpu.dot_dimension_numbers<[1], [0], [0], [1], [0, 0, 1, 1], [], []>} : vector<32x16xf32>, vector<16x2xf32>, vector<32x2xf32> -> vector<32x2xf32>
    %51 = arith.addf %47, %50 : vector<32x2xf32>
    %c256 = arith.constant 256 : index
    %c0_31 = arith.constant 0 : index
    %52 = vector.load %arg1[%c256, %c0_31] : memref<376x128xf32, #tpu.memory_space<vmem>>, vector<32x16xf32>
    %53 = vector.extract_strided_slice %40 {offsets = [0, 6], sizes = [16, 2], strides = [1, 1]} : vector<16x8xf32> to vector<16x2xf32>
    %cst_32 = arith.constant dense<0.000000e+00> : vector<32x2xf32>
    %54 = tpu.matmul %52, %53, %cst_32 {dimension_numbers = #tpu.dot_dimension_numbers<[1], [0], [0], [1], [0, 0, 1, 1], [], []>} : vector<32x16xf32>, vector<16x2xf32>, vector<32x2xf32> -> vector<32x2xf32>
    %55 = arith.addf %51, %54 : vector<32x2xf32>
    %c288 = arith.constant 288 : index
    %c0_33 = arith.constant 0 : index
    %56 = vector.load %arg1[%c288, %c0_33] : memref<376x128xf32, #tpu.memory_space<vmem>>, vector<32x1xf32>
    %57 = vector.broadcast %56 : vector<32x1xf32> to vector<32x2xf32>
    %58 = arith.addf %55, %57 : vector<32x2xf32>
    %cst_34 = arith.constant 0.000000e+00 : f32
    %59 = vector.broadcast %cst_34 : f32 to vector<32x2xf32>
    %60 = arith.maximumf %58, %59 : vector<32x2xf32>
    %c320 = arith.constant 320 : index
    %c0_35 = arith.constant 0 : index
    %61 = vector.load %arg1[%c320, %c0_35] : memref<376x128xf32, #tpu.memory_space<vmem>>, vector<16x32xf32>
    %cst_36 = arith.constant dense<0.000000e+00> : vector<16x2xf32>
    %62 = tpu.matmul %61, %60, %cst_36 {dimension_numbers = #tpu.dot_dimension_numbers<[1], [0], [0], [1], [0, 0, 1, 1], [], []>} : vector<16x32xf32>, vector<32x2xf32>, vector<16x2xf32> -> vector<16x2xf32>
    %c336 = arith.constant 336 : index
    %c0_37 = arith.constant 0 : index
    %63 = vector.load %arg1[%c336, %c0_37] : memref<376x128xf32, #tpu.memory_space<vmem>>, vector<16x1xf32>
    %64 = vector.broadcast %63 : vector<16x1xf32> to vector<16x2xf32>
    %65 = arith.addf %62, %64 : vector<16x2xf32>
    %cst_38 = arith.constant 0.000000e+00 : f32
    %66 = vector.broadcast %cst_38 : f32 to vector<16x2xf32>
    %67 = arith.maximumf %65, %66 : vector<16x2xf32>
    %c352 = arith.constant 352 : index
    %c0_39 = arith.constant 0 : index
    %68 = vector.load %arg1[%c352, %c0_39] : memref<376x128xf32, #tpu.memory_space<vmem>>, vector<16x1xf32>
    %69 = vector.broadcast %68 : vector<16x1xf32> to vector<16x2xf32>
    %70 = arith.mulf %67, %69 : vector<16x2xf32>
    %cst_40 = arith.constant dense<0.000000e+00> : vector<2xf32>
    %71 = vector.multi_reduction <add>, %70, %cst_40 [0] : vector<16x2xf32> to vector<2xf32>
    %72 = vector.shape_cast %71 : vector<2xf32> to vector<1x2xf32>
    %c368 = arith.constant 368 : index
    %c0_41 = arith.constant 0 : index
    %73 = vector.load %arg1[%c368, %c0_41] : memref<376x128xf32, #tpu.memory_space<vmem>>, vector<1x1xf32>
    %74 = vector.broadcast %73 : vector<1x1xf32> to vector<1x2xf32>
    %75 = arith.addf %72, %74 : vector<1x2xf32>
    %c0_42 = arith.constant 0 : index
    %c0_43 = arith.constant 0 : index
    %76 = vector.load %arg2[%c0_42, %c0_43] : memref<1x2xf32, #tpu.memory_space<vmem>>, vector<1x2xf32>
    tpu.vector_store %arg2[%c0_42, %c0_43], %75 {strides = array<i32>} : memref<1x2xf32, #tpu.memory_space<vmem>>, vector<1x2xf32>,
    return
  }
}

</mosaic_0001>

<llo_original>
// kernel: deep_conv_net_forward.1
$region0: #{deep_conv_net_forward.1}
  #allocation0 [shape = 'u32[]', space=smem, size = 0x4, offset = 0x4, fixed_abs, tag = 'smem constant byte address 0x4 - core index']
  #allocation1 [shape = 'u32[144,128]{1,0:T(1,128)}', space=vmem, size = 0x12000, scoped, tag = 'internal scratch']
  %s0 = inlined_call_operand.vmem [shape: f32[8,128], index: 0, kind: input, shape index: {}]
  %s1 = inlined_call_operand.hbm [shape: f32[376,128], index: 1, kind: input, shape index: {}]
  %s2 = inlined_call_operand.hbm [shape: f32[1,2], index: 2, kind: output, shape index: {}]
  %s3 = sld [smem:[#allocation0]]
  $region22: #{deep_conv_net_forward.1} parent=0
    _
  %s5 = ssub.s32 1, %s3
  %s6 = scalar_select 0, %s5, %s3
  $region1: #{deep_conv_net_forward.1} parent=0
    #allocation2 [shape = 'u8[192512]{0}', space=vmem, size = 0x2f000, scoped, tag = 'input window, operand 1, single buffered']
    #allocation3 [shape = 's32[1]{0}', space=sflag, size = 0x4, scoped, tag = 'scoped memory for deep_conv_net_forward.1']
    #allocation4 [shape = 's32[1]{0}', space=sflag, size = 0x4, scoped, tag = 'scoped memory for deep_conv_net_forward.1']
    #allocation5 [shape = 'u8[512]{0}', space=vmem, size = 0x400, scoped, tag = 'output window, operand 0, single buffered']
    %7 = vsyncpa [#allocation3], 0
    %8 = vsyncpa [#allocation4], 0
    // Predicated region
    $region2: #{deep_conv_net_forward.1} parent=1 // pred_check
      _
    $region3: #{deep_conv_net_forward.1} parent=1 // pred_check_branch
      %10 = sbr.rel (0) target = $region5
    $region4: #{deep_conv_net_forward.1} parent=1 // pred_region
      _
    $region5: #{deep_conv_net_forward.1} parent=1 // pred_fallthru
      _
    // Predicated region
    $region6: #{deep_conv_net_forward.1} parent=1 // pred_check
      _
    $region7: #{deep_conv_net_forward.1} parent=1 // pred_check_branch
      %12 = sbr.rel (0) target = $region9
    $region8: #{deep_conv_net_forward.1} parent=1 // pred_region
      %s14 = ssub.s32 6016, 6016
      %15 = vsyncadd [#allocation3], %s14
      %s16 = sshll.u32 [#allocation2], 4
      %s17 = int_to_ptr.vmem [resolvable:$true] %s16
      %22 = dma.hbm_to_vmem [thread:$0]  %s1, 6016, %s17, [#allocation3], 128, 128, 8
    $region9: #{deep_conv_net_forward.1} parent=1 // pred_fallthru
      _
    // Predicated region
    $region10: #{deep_conv_net_forward.1} parent=1 // pred_check
      _
    $region11: #{deep_conv_net_forward.1} parent=1 // pred_check_branch
      %24 = sbr.rel (0) target = $region13
    $region12: #{deep_conv_net_forward.1} parent=1 // pred_region
      %25 = dma.done [#allocation3], 6016
    $region13: #{deep_conv_net_forward.1} parent=1 // pred_fallthru
      _
    %v26 = vld [vmem:[%s0] sm:$0xff]
    %v27 = vld [vmem:[#allocation2] sm:$0xff]
    %v28 = vld [vmem:[#allocation2 + $0x8] sm:$0xff]
    %29 = vrot.lane.b32.xlu0 %v26, 127
    %v30 = vpop.permute.xlu0 %29
    %vm31 = vcmask 64512
    %v33 = vsel %vm31, %v28, 0
    %35 = vmatprep.subr.mxu0 0.0
    %36 = vmatpush1.msra.mxu0 0.0
    %37 = vmatprep.subr.mxu0 0.0
    %38 = vmatpush1.msra.mxu0 0.0
    %39 = vmatprep.subr.mxu0 0.0
    %40 = vmatpush1.msra.mxu0 0.0
    %41 = vmatprep.subr.mxu0 0.0
    %42 = vmatpush1.msra.mxu0 0.0
    %43 = vmatprep.subr.mxu0 0.0
    %44 = vmatpush1.msra.mxu0 0.0
    %45 = vmatprep.subr.mxu0 0.0
    %46 = vmatpush1.msra.mxu0 0.0
    %47 = vmatprep.subr.mxu0 0.0
    %48 = vmatpush1.msra.mxu0 0.0
    %49 = vmatprep.subr.mxu0 0.0
    %50 = vmatpush1.msra.mxu0 0.0
    %51 = vmatprep.subr.mxu0 0.0
    %52 = vmatpush1.msra.mxu0 0.0
    %53 = vmatprep.subr.mxu0 0.0
    %54 = vmatpush1.msra.mxu0 0.0
    %55 = vmatprep.subr.mxu0 0.0
    %56 = vmatpush1.msra.mxu0 0.0
    %57 = vmatprep.subr.mxu0 0.0
    %58 = vmatpush1.msra.mxu0 0.0
    %59 = vmatprep.subr.mxu0 0.0
    %60 = vmatpush1.msra.mxu0 0.0
    %61 = vmatprep.subr.mxu0 0.0
    %62 = vmatpush1.msra.mxu0 0.0
    %63 = vmatprep.subr.mxu0 0.0
    %64 = vmatpush1.msra.mxu0 0.0
    %65 = vmatprep.subr.mxu0 0.0
    %66 = vmatpush1.msra.mxu0 %v30
    %67 = vmatprep.subr.mxu0 0.0
    %68 = vmatpush2.msra.mxu0 0.0
    %69 = vmatprep.subr.mxu0 0.0
    %70 = vmatpush2.msra.mxu0 0.0
    %71 = vmatprep.subr.mxu0 0.0
    %72 = vmatpush2.msra.mxu0 0.0
    %73 = vmatprep.subr.mxu0 0.0
    %74 = vmatpush2.msra.mxu0 0.0
    %75 = vmatprep.subr.mxu0 0.0
    %76 = vmatpush2.msra.mxu0 0.0
    %77 = vmatprep.subr.mxu0 0.0
    %78 = vmatpush2.msra.mxu0 0.0
    %79 = vmatprep.subr.mxu0 0.0
    %80 = vmatpush2.msra.mxu0 0.0
    %81 = vmatprep.subr.mxu0 0.0
    %82 = vmatpush2.msra.mxu0 0.0
    %83 = vmatprep.subr.mxu0 0.0
    %84 = vmatpush2.msra.mxu0 0.0
    %85 = vmatprep.subr.mxu0 0.0
    %86 = vmatpush2.msra.mxu0 0.0
    %87 = vmatprep.subr.mxu0 0.0
    %88 = vmatpush2.msra.mxu0 0.0
    %89 = vmatprep.subr.mxu0 0.0
    %90 = vmatpush2.msra.mxu0 0.0
    %91 = vmatprep.subr.mxu0 0.0
    %92 = vmatpush2.msra.mxu0 0.0
    %93 = vmatprep.subr.mxu0 0.0
    %94 = vmatpush2.msra.mxu0 0.0
    %95 = vmatprep.subr.mxu0 0.0
    %96 = vmatpush2.msra.mxu0 0.0
    %97 = vmatprep.subr.mxu0 0.0
    %98 = vmatpush2.msra.mxu0 0.0
    %99 = vmatprep.mubr.f32.mxu0 0.0
    %100 = vmatmul.mubr.f32.gmra.mxu0 %v33
    %v101 = vpop.f32.mrf.mxu0
    %v102 = vadd.f32 0.0, %v101
    %v103 = vpop.f32.mrf.mxu0
    %104 = vdwg.mxu0
    %v106 = vsel %vm31, %v27, 0
    %108 = vmatprep.subr.mxu0 0.0
    %109 = vmatpush1.msra.mxu0 0.0
    %110 = vmatprep.subr.mxu0 0.0
    %111 = vmatpush1.msra.mxu0 0.0
    %112 = vmatprep.subr.mxu0 0.0
    %113 = vmatpush1.msra.mxu0 0.0
    %114 = vmatprep.subr.mxu0 0.0
    %115 = vmatpush1.msra.mxu0 0.0
    %116 = vmatprep.subr.mxu0 0.0
    %117 = vmatpush1.msra.mxu0 0.0
    %118 = vmatprep.subr.mxu0 0.0
    %119 = vmatpush1.msra.mxu0 0.0
    %120 = vmatprep.subr.mxu0 0.0
    %121 = vmatpush1.msra.mxu0 0.0
    %122 = vmatprep.subr.mxu0 0.0
    %123 = vmatpush1.msra.mxu0 0.0
    %124 = vmatprep.subr.mxu0 0.0
    %125 = vmatpush1.msra.mxu0 0.0
    %126 = vmatprep.subr.mxu0 0.0
    %127 = vmatpush1.msra.mxu0 0.0
    %128 = vmatprep.subr.mxu0 0.0
    %129 = vmatpush1.msra.mxu0 0.0
    %130 = vmatprep.subr.mxu0 0.0
    %131 = vmatpush1.msra.mxu0 0.0
    %132 = vmatprep.subr.mxu0 0.0
    %133 = vmatpush1.msra.mxu0 0.0
    %134 = vmatprep.subr.mxu0 0.0
    %135 = vmatpush1.msra.mxu0 0.0
    %136 = vmatprep.subr.mxu0 0.0
    %137 = vmatpush1.msra.mxu0 0.0
    %138 = vmatprep.subr.mxu0 0.0
    %139 = vmatpush1.msra.mxu0 %v26
    %140 = vmatprep.subr.mxu0 0.0
    %141 = vmatpush2.msra.mxu0 0.0
    %142 = vmatprep.subr.mxu0 0.0
    %143 = vmatpush2.msra.mxu0 0.0
    %144 = vmatprep.subr.mxu0 0.0
    %145 = vmatpush2.msra.mxu0 0.0
    %146 = vmatprep.subr.mxu0 0.0
    %147 = vmatpush2.msra.mxu0 0.0
    %148 = vmatprep.subr.mxu0 0.0
    %149 = vmatpush2.msra.mxu0 0.0
    %150 = vmatprep.subr.mxu0 0.0
    %151 = vmatpush2.msra.mxu0 0.0
    %152 = vmatprep.subr.mxu0 0.0
    %153 = vmatpush2.msra.mxu0 0.0
    %154 = vmatprep.subr.mxu0 0.0
    %155 = vmatpush2.msra.mxu0 0.0
    %156 = vmatprep.subr.mxu0 0.0
    %157 = vmatpush2.msra.mxu0 0.0
    %158 = vmatprep.subr.mxu0 0.0
    %159 = vmatpush2.msra.mxu0 0.0
    %160 = vmatprep.subr.mxu0 0.0
    %161 = vmatpush2.msra.mxu0 0.0
    %162 = vmatprep.subr.mxu0 0.0
    %163 = vmatpush2.msra.mxu0 0.0
    %164 = vmatprep.subr.mxu0 0.0
    %165 = vmatpush2.msra.mxu0 0.0
    %166 = vmatprep.subr.mxu0 0.0
    %167 = vmatpush2.msra.mxu0 0.0
    %168 = vmatprep.subr.mxu0 0.0
    %169 = vmatpush2.msra.mxu0 0.0
    %170 = vmatprep.subr.mxu0 0.0
    %171 = vmatpush2.msra.mxu0 0.0
    %172 = vmatprep.mubr.f32.mxu0 0.0
    %173 = vmatmul.mubr.f32.gmra.mxu0 %v106
    %v174 = vpop.f32.mrf.mxu0
    %v175 = vadd.f32 %v102, %v174
    %v176 = vpop.f32.mrf.mxu0
    %177 = vdwg.mxu0
    %v178 = vld [vmem:[#allocation2 + $0x10] sm:$0xff]
    %179 = vrot.lane.b32.xlu0 %v26, 126
    %v180 = vpop.permute.xlu0 %179
    %v182 = vsel %vm31, %v178, 0
    %184 = vmatprep.subr.mxu0 0.0
    %185 = vmatpush1.msra.mxu0 0.0
    %186 = vmatprep.subr.mxu0 0.0
    %187 = vmatpush1.msra.mxu0 0.0
    %188 = vmatprep.subr.mxu0 0.0
    %189 = vmatpush1.msra.mxu0 0.0
    %190 = vmatprep.subr.mxu0 0.0
    %191 = vmatpush1.msra.mxu0 0.0
    %192 = vmatprep.subr.mxu0 0.0
    %193 = vmatpush1.msra.mxu0 0.0
    %194 = vmatprep.subr.mxu0 0.0
    %195 = vmatpush1.msra.mxu0 0.0
    %196 = vmatprep.subr.mxu0 0.0
    %197 = vmatpush1.msra.mxu0 0.0
    %198 = vmatprep.subr.mxu0 0.0
    %199 = vmatpush1.msra.mxu0 0.0
    %200 = vmatprep.subr.mxu0 0.0
    %201 = vmatpush1.msra.mxu0 0.0
    %202 = vmatprep.subr.mxu0 0.0
    %203 = vmatpush1.msra.mxu0 0.0
    %204 = vmatprep.subr.mxu0 0.0
    %205 = vmatpush1.msra.mxu0 0.0
    %206 = vmatprep.subr.mxu0 0.0
    %207 = vmatpush1.msra.mxu0 0.0
    %208 = vmatprep.subr.mxu0 0.0
    %209 = vmatpush1.msra.mxu0 0.0
    %210 = vmatprep.subr.mxu0 0.0
    %211 = vmatpush1.msra.mxu0 0.0
    %212 = vmatprep.subr.mxu0 0.0
    %213 = vmatpush1.msra.mxu0 0.0
    %214 = vmatprep.subr.mxu0 0.0
    %215 = vmatpush1.msra.mxu0 %v180
    %216 = vmatprep.subr.mxu0 0.0
    %217 = vmatpush2.msra.mxu0 0.0
    %218 = vmatprep.subr.mxu0 0.0
    %219 = vmatpush2.msra.mxu0 0.0
    %220 = vmatprep.subr.mxu0 0.0
    %221 = vmatpush2.msra.mxu0 0.0
    %222 = vmatprep.subr.mxu0 0.0
    %223 = vmatpush2.msra.mxu0 0.0
    %224 = vmatprep.subr.mxu0 0.0
    %225 = vmatpush2.msra.mxu0 0.0
    %226 = vmatprep.subr.mxu0 0.0
    %227 = vmatpush2.msra.mxu0 0.0
    %228 = vmatprep.subr.mxu0 0.0
    %229 = vmatpush2.msra.mxu0 0.0
    %230 = vmatprep.subr.mxu0 0.0
    %231 = vmatpush2.msra.mxu0 0.0
    %232 = vmatprep.subr.mxu0 0.0
    %233 = vmatpush2.msra.mxu0 0.0
    %234 = vmatprep.subr.mxu0 0.0
    %235 = vmatpush2.msra.mxu0 0.0
    %236 = vmatprep.subr.mxu0 0.0
    %237 = vmatpush2.msra.mxu0 0.0
    %238 = vmatprep.subr.mxu0 0.0
    %239 = vmatpush2.msra.mxu0 0.0
    %240 = vmatprep.subr.mxu0 0.0
    %241 = vmatpush2.msra.mxu0 0.0
    %242 = vmatprep.subr.mxu0 0.0
    %243 = vmatpush2.msra.mxu0 0.0
    %244 = vmatprep.subr.mxu0 0.0
    %245 = vmatpush2.msra.mxu0 0.0
    %246 = vmatprep.subr.mxu0 0.0
    %247 = vmatpush2.msra.mxu0 0.0
    %248 = vmatprep.mubr.f32.mxu0 0.0
    %249 = vmatmul.mubr.f32.gmra.mxu0 %v182
    %v250 = vpop.f32.mrf.mxu0
    %v251 = vadd.f32 0.0, %v250
    %v252 = vpop.f32.mrf.mxu0
    %253 = vdwg.mxu0
    %v254 = vadd.f32 %v175, %v251
    %v255 = vld [vmem:[#allocation2 + $0x18] sm:$0xff]
    %257 = vset.pattern.permute.xlu0 0
    %258 = vperm.xlu0 %257, %v255
    %v259 = vpop.permute.xlu0 %258
    %v261 = vadd.f32 %v254, %v259
    %v262 = vmax.f32 %v261, 0.0
    %263 = vrot.lane.b32.xlu0 %v262, 127
    %v264 = vpop.permute.xlu0 %263
    %v265 = vmax.f32 %v262, %v264
    %v266 = vld [vmem:[#allocation2 + $0x20] sm:$0xff]
    %v267 = vld [vmem:[#allocation2 + $0x28] sm:$0xff]
    %v268 = vld [vmem:[#allocation2 + $0x30] sm:$0xff]
    %v269 = vld [vmem:[#allocation2 + $0x38] sm:$0xff]
    %v270 = vld [vmem:[#allocation2 + $0x40] sm:$0xff]
    %vm271 = vcmask 326656
    %v273 = vsel %vm271, %v265, 0
    %275 = vmatprep.subr.mxu0 0.0
    %276 = vmatpush1.msra.mxu0 0.0
    %277 = vmatprep.subr.mxu0 0.0
    %278 = vmatpush1.msra.mxu0 0.0
    %279 = vmatprep.subr.mxu0 0.0
    %280 = vmatpush1.msra.mxu0 0.0
    %281 = vmatprep.subr.mxu0 0.0
    %282 = vmatpush1.msra.mxu0 0.0
    %283 = vmatprep.subr.mxu0 0.0
    %284 = vmatpush1.msra.mxu0 0.0
    %285 = vmatprep.subr.mxu0 0.0
    %286 = vmatpush1.msra.mxu0 0.0
    %287 = vmatprep.subr.mxu0 0.0
    %288 = vmatpush1.msra.mxu0 0.0
    %289 = vmatprep.subr.mxu0 0.0
    %290 = vmatpush1.msra.mxu0 0.0
    %291 = vmatprep.subr.mxu0 0.0
    %292 = vmatpush1.msra.mxu0 0.0
    %293 = vmatprep.subr.mxu0 0.0
    %294 = vmatpush1.msra.mxu0 0.0
    %295 = vmatprep.subr.mxu0 0.0
    %296 = vmatpush1.msra.mxu0 0.0
    %297 = vmatprep.subr.mxu0 0.0
    %298 = vmatpush1.msra.mxu0 %v270
    %299 = vmatprep.subr.mxu0 0.0
    %300 = vmatpush1.msra.mxu0 %v269
    %301 = vmatprep.subr.mxu0 0.0
    %302 = vmatpush1.msra.mxu0 %v268
    %303 = vmatprep.subr.mxu0 0.0
    %304 = vmatpush1.msra.mxu0 %v267
    %305 = vmatprep.subr.mxu0 0.0
    %306 = vmatpush1.msra.mxu0 %v266
    %307 = vmatprep.subr.mxu0 0.0
    %308 = vmatpush2.msra.mxu0 0.0
    %309 = vmatprep.subr.mxu0 0.0
    %310 = vmatpush2.msra.mxu0 0.0
    %311 = vmatprep.subr.mxu0 0.0
    %312 = vmatpush2.msra.mxu0 0.0
    %313 = vmatprep.subr.mxu0 0.0
    %314 = vmatpush2.msra.mxu0 0.0
    %315 = vmatprep.subr.mxu0 0.0
    %316 = vmatpush2.msra.mxu0 0.0
    %317 = vmatprep.subr.mxu0 0.0
    %318 = vmatpush2.msra.mxu0 0.0
    %319 = vmatprep.subr.mxu0 0.0
    %320 = vmatpush2.msra.mxu0 0.0
    %321 = vmatprep.subr.mxu0 0.0
    %322 = vmatpush2.msra.mxu0 0.0
    %323 = vmatprep.subr.mxu0 0.0
    %324 = vmatpush2.msra.mxu0 0.0
    %325 = vmatprep.subr.mxu0 0.0
    %326 = vmatpush2.msra.mxu0 0.0
    %327 = vmatprep.subr.mxu0 0.0
    %328 = vmatpush2.msra.mxu0 0.0
    %329 = vmatprep.subr.mxu0 0.0
    %330 = vmatpush2.msra.mxu0 0.0
    %331 = vmatprep.subr.mxu0 0.0
    %332 = vmatpush2.msra.mxu0 0.0
    %333 = vmatprep.subr.mxu0 0.0
    %334 = vmatpush2.msra.mxu0 0.0
    %335 = vmatprep.subr.mxu0 0.0
    %336 = vmatpush2.msra.mxu0 0.0
    %337 = vmatprep.subr.mxu0 0.0
    %338 = vmatpush2.msra.mxu0 0.0
    %339 = vmatprep.mubr.f32.mxu0 0.0
    %340 = vmatmul.mubr.f32.gmra.mxu0 %v273
    %v341 = vpop.f32.mrf.mxu0
    %v342 = vadd.f32 0.0, %v341
    %v343 = vpop.f32.mrf.mxu0
    %344 = vdwg.mxu0
    %v345 = vld [vmem:[#allocation2 + $0x48] sm:$0xff]
    %v346 = vld [vmem:[#allocation2 + $0x50] sm:$0xff]
    %v347 = vld [vmem:[#allocation2 + $0x58] sm:$0xff]
    %v348 = vld [vmem:[#allocation2 + $0x60] sm:$0xff]
    %349 = vrot.lane.b32.xlu0 %v342, 127
    %v350 = vpop.permute.xlu0 %349
    %v352 = vsel %vm31, %v347, 0
    %v355 = vsel %vm31, %v348, 0
    %357 = vmatprep.subr.mxu0 0.0
    %358 = vmatpush1.msra.mxu0 0.0
    %359 = vmatprep.subr.mxu0 0.0
    %360 = vmatpush1.msra.mxu0 0.0
    %361 = vmatprep.subr.mxu0 0.0
    %362 = vmatpush1.msra.mxu0 0.0
    %363 = vmatprep.subr.mxu0 0.0
    %364 = vmatpush1.msra.mxu0 0.0
    %365 = vmatprep.subr.mxu0 0.0
    %366 = vmatpush1.msra.mxu0 0.0
    %367 = vmatprep.subr.mxu0 0.0
    %368 = vmatpush1.msra.mxu0 0.0
    %369 = vmatprep.subr.mxu0 0.0
    %370 = vmatpush1.msra.mxu0 0.0
    %371 = vmatprep.subr.mxu0 0.0
    %372 = vmatpush1.msra.mxu0 0.0
    %373 = vmatprep.subr.mxu0 0.0
    %374 = vmatpush1.msra.mxu0 0.0
    %375 = vmatprep.subr.mxu0 0.0
    %376 = vmatpush1.msra.mxu0 0.0
    %377 = vmatprep.subr.mxu0 0.0
    %378 = vmatpush1.msra.mxu0 0.0
    %379 = vmatprep.subr.mxu0 0.0
    %380 = vmatpush1.msra.mxu0 0.0
    %381 = vmatprep.subr.mxu0 0.0
    %382 = vmatpush1.msra.mxu0 0.0
    %383 = vmatprep.subr.mxu0 0.0
    %384 = vmatpush1.msra.mxu0 0.0
    %385 = vmatprep.subr.mxu0 0.0
    %386 = vmatpush1.msra.mxu0 0.0
    %387 = vmatprep.subr.mxu0 0.0
    %388 = vmatpush1.msra.mxu0 %v350
    %389 = vmatprep.subr.mxu0 0.0
    %390 = vmatpush2.msra.mxu0 0.0
    %391 = vmatprep.subr.mxu0 0.0
    %392 = vmatpush2.msra.mxu0 0.0
    %393 = vmatprep.subr.mxu0 0.0
    %394 = vmatpush2.msra.mxu0 0.0
    %395 = vmatprep.subr.mxu0 0.0
    %396 = vmatpush2.msra.mxu0 0.0
    %397 = vmatprep.subr.mxu0 0.0
    %398 = vmatpush2.msra.mxu0 0.0
    %399 = vmatprep.subr.mxu0 0.0
    %400 = vmatpush2.msra.mxu0 0.0
    %401 = vmatprep.subr.mxu0 0.0
    %402 = vmatpush2.msra.mxu0 0.0
    %403 = vmatprep.subr.mxu0 0.0
    %404 = vmatpush2.msra.mxu0 0.0
    %405 = vmatprep.subr.mxu0 0.0
    %406 = vmatpush2.msra.mxu0 0.0
    %407 = vmatprep.subr.mxu0 0.0
    %408 = vmatpush2.msra.mxu0 0.0
    %409 = vmatprep.subr.mxu0 0.0
    %410 = vmatpush2.msra.mxu0 0.0
    %411 = vmatprep.subr.mxu0 0.0
    %412 = vmatpush2.msra.mxu0 0.0
    %413 = vmatprep.subr.mxu0 0.0
    %414 = vmatpush2.msra.mxu0 0.0
    %415 = vmatprep.subr.mxu0 0.0
    %416 = vmatpush2.msra.mxu0 0.0
    %417 = vmatprep.subr.mxu0 0.0
    %418 = vmatpush2.msra.mxu0 0.0
    %419 = vmatprep.subr.mxu0 0.0
    %420 = vmatpush2.msra.mxu0 0.0
    %421 = vmatprep.mubr.f32.mxu0 0.0
    %422 = vmatmul.mubr.f32.gmra.mxu0 %v352
    %v423 = vpop.f32.mrf.mxu0
    %v424 = vadd.f32 0.0, %v423
    %v425 = vpop.f32.mrf.mxu0
    %426 = vmatprep.mubr.f32.mxu0 0.0
    %427 = vmatmul.mubr.f32.gmra.mxu0 %v355
    %v428 = vpop.f32.mrf.mxu0
    %v429 = vadd.f32 0.0, %v428
    %v430 = vpop.f32.mrf.mxu0
    %431 = vdwg.mxu0
    %v433 = vsel %vm31, %v345, 0
    %v436 = vsel %vm31, %v346, 0
    %438 = vmatprep.subr.mxu0 0.0
    %439 = vmatpush1.msra.mxu0 0.0
    %440 = vmatprep.subr.mxu0 0.0
    %441 = vmatpush1.msra.mxu0 0.0
    %442 = vmatprep.subr.mxu0 0.0
    %443 = vmatpush1.msra.mxu0 0.0
    %444 = vmatprep.subr.mxu0 0.0
    %445 = vmatpush1.msra.mxu0 0.0
    %446 = vmatprep.subr.mxu0 0.0
    %447 = vmatpush1.msra.mxu0 0.0
    %448 = vmatprep.subr.mxu0 0.0
    %449 = vmatpush1.msra.mxu0 0.0
    %450 = vmatprep.subr.mxu0 0.0
    %451 = vmatpush1.msra.mxu0 0.0
    %452 = vmatprep.subr.mxu0 0.0
    %453 = vmatpush1.msra.mxu0 0.0
    %454 = vmatprep.subr.mxu0 0.0
    %455 = vmatpush1.msra.mxu0 0.0
    %456 = vmatprep.subr.mxu0 0.0
    %457 = vmatpush1.msra.mxu0 0.0
    %458 = vmatprep.subr.mxu0 0.0
    %459 = vmatpush1.msra.mxu0 0.0
    %460 = vmatprep.subr.mxu0 0.0
    %461 = vmatpush1.msra.mxu0 0.0
    %462 = vmatprep.subr.mxu0 0.0
    %463 = vmatpush1.msra.mxu0 0.0
    %464 = vmatprep.subr.mxu0 0.0
    %465 = vmatpush1.msra.mxu0 0.0
    %466 = vmatprep.subr.mxu0 0.0
    %467 = vmatpush1.msra.mxu0 0.0
    %468 = vmatprep.subr.mxu0 0.0
    %469 = vmatpush1.msra.mxu0 %v342
    %470 = vmatprep.subr.mxu0 0.0
    %471 = vmatpush2.msra.mxu0 0.0
    %472 = vmatprep.subr.mxu0 0.0
    %473 = vmatpush2.msra.mxu0 0.0
    %474 = vmatprep.subr.mxu0 0.0
    %475 = vmatpush2.msra.mxu0 0.0
    %476 = vmatprep.subr.mxu0 0.0
    %477 = vmatpush2.msra.mxu0 0.0
    %478 = vmatprep.subr.mxu0 0.0
    %479 = vmatpush2.msra.mxu0 0.0
    %480 = vmatprep.subr.mxu0 0.0
    %481 = vmatpush2.msra.mxu0 0.0
    %482 = vmatprep.subr.mxu0 0.0
    %483 = vmatpush2.msra.mxu0 0.0
    %484 = vmatprep.subr.mxu0 0.0
    %485 = vmatpush2.msra.mxu0 0.0
    %486 = vmatprep.subr.mxu0 0.0
    %487 = vmatpush2.msra.mxu0 0.0
    %488 = vmatprep.subr.mxu0 0.0
    %489 = vmatpush2.msra.mxu0 0.0
    %490 = vmatprep.subr.mxu0 0.0
    %491 = vmatpush2.msra.mxu0 0.0
    %492 = vmatprep.subr.mxu0 0.0
    %493 = vmatpush2.msra.mxu0 0.0
    %494 = vmatprep.subr.mxu0 0.0
    %495 = vmatpush2.msra.mxu0 0.0
    %496 = vmatprep.subr.mxu0 0.0
    %497 = vmatpush2.msra.mxu0 0.0
    %498 = vmatprep.subr.mxu0 0.0
    %499 = vmatpush2.msra.mxu0 0.0
    %500 = vmatprep.subr.mxu0 0.0
    %501 = vmatpush2.msra.mxu0 0.0
    %502 = vmatprep.mubr.f32.mxu0 0.0
    %503 = vmatmul.mubr.f32.gmra.mxu0 %v433
    %v504 = vpop.f32.mrf.mxu0
    %v505 = vadd.f32 %v424, %v504
    %v506 = vpop.f32.mrf.mxu0
    %507 = vmatprep.mubr.f32.mxu0 0.0
    %508 = vmatmul.mubr.f32.gmra.mxu0 %v436
    %v509 = vpop.f32.mrf.mxu0
    %v510 = vadd.f32 %v429, %v509
    %v511 = vpop.f32.mrf.mxu0
    %512 = vdwg.mxu0
    %v513 = vld [vmem:[#allocation2 + $0x68] sm:$0xff]
    %v514 = vld [vmem:[#allocation2 + $0x70] sm:$0xff]
    %515 = vrot.lane.b32.xlu0 %v342, 126
    %v516 = vpop.permute.xlu0 %515
    %v518 = vsel %vm31, %v513, 0
    %v521 = vsel %vm31, %v514, 0
    %523 = vmatprep.subr.mxu0 0.0
    %524 = vmatpush1.msra.mxu0 0.0
    %525 = vmatprep.subr.mxu0 0.0
    %526 = vmatpush1.msra.mxu0 0.0
    %527 = vmatprep.subr.mxu0 0.0
    %528 = vmatpush1.msra.mxu0 0.0
    %529 = vmatprep.subr.mxu0 0.0
    %530 = vmatpush1.msra.mxu0 0.0
    %531 = vmatprep.subr.mxu0 0.0
    %532 = vmatpush1.msra.mxu0 0.0
    %533 = vmatprep.subr.mxu0 0.0
    %534 = vmatpush1.msra.mxu0 0.0
    %535 = vmatprep.subr.mxu0 0.0
    %536 = vmatpush1.msra.mxu0 0.0
    %537 = vmatprep.subr.mxu0 0.0
    %538 = vmatpush1.msra.mxu0 0.0
    %539 = vmatprep.subr.mxu0 0.0
    %540 = vmatpush1.msra.mxu0 0.0
    %541 = vmatprep.subr.mxu0 0.0
    %542 = vmatpush1.msra.mxu0 0.0
    %543 = vmatprep.subr.mxu0 0.0
    %544 = vmatpush1.msra.mxu0 0.0
    %545 = vmatprep.subr.mxu0 0.0
    %546 = vmatpush1.msra.mxu0 0.0
    %547 = vmatprep.subr.mxu0 0.0
    %548 = vmatpush1.msra.mxu0 0.0
    %549 = vmatprep.subr.mxu0 0.0
    %550 = vmatpush1.msra.mxu0 0.0
    %551 = vmatprep.subr.mxu0 0.0
    %552 = vmatpush1.msra.mxu0 0.0
    %553 = vmatprep.subr.mxu0 0.0
    %554 = vmatpush1.msra.mxu0 %v516
    %555 = vmatprep.subr.mxu0 0.0
    %556 = vmatpush2.msra.mxu0 0.0
    %557 = vmatprep.subr.mxu0 0.0
    %558 = vmatpush2.msra.mxu0 0.0
    %559 = vmatprep.subr.mxu0 0.0
    %560 = vmatpush2.msra.mxu0 0.0
    %561 = vmatprep.subr.mxu0 0.0
    %562 = vmatpush2.msra.mxu0 0.0
    %563 = vmatprep.subr.mxu0 0.0
    %564 = vmatpush2.msra.mxu0 0.0
    %565 = vmatprep.subr.mxu0 0.0
    %566 = vmatpush2.msra.mxu0 0.0
    %567 = vmatprep.subr.mxu0 0.0
    %568 = vmatpush2.msra.mxu0 0.0
    %569 = vmatprep.subr.mxu0 0.0
    %570 = vmatpush2.msra.mxu0 0.0
    %571 = vmatprep.subr.mxu0 0.0
    %572 = vmatpush2.msra.mxu0 0.0
    %573 = vmatprep.subr.mxu0 0.0
    %574 = vmatpush2.msra.mxu0 0.0
    %575 = vmatprep.subr.mxu0 0.0
    %576 = vmatpush2.msra.mxu0 0.0
    %577 = vmatprep.subr.mxu0 0.0
    %578 = vmatpush2.msra.mxu0 0.0
    %579 = vmatprep.subr.mxu0 0.0
    %580 = vmatpush2.msra.mxu0 0.0
    %581 = vmatprep.subr.mxu0 0.0
    %582 = vmatpush2.msra.mxu0 0.0
    %583 = vmatprep.subr.mxu0 0.0
    %584 = vmatpush2.msra.mxu0 0.0
    %585 = vmatprep.subr.mxu0 0.0
    %586 = vmatpush2.msra.mxu0 0.0
    %587 = vmatprep.mubr.f32.mxu0 0.0
    %588 = vmatmul.mubr.f32.gmra.mxu0 %v518
    %v589 = vpop.f32.mrf.mxu0
    %v590 = vadd.f32 0.0, %v589
    %v591 = vpop.f32.mrf.mxu0
    %592 = vmatprep.mubr.f32.mxu0 0.0
    %593 = vmatmul.mubr.f32.gmra.mxu0 %v521
    %v594 = vpop.f32.mrf.mxu0
    %v595 = vadd.f32 0.0, %v594
    %v596 = vpop.f32.mrf.mxu0
    %597 = vdwg.mxu0
    %v598 = vadd.f32 %v505, %v590
    %v599 = vadd.f32 %v510, %v595
    %v600 = vld [vmem:[#allocation2 + $0x78] sm:$0xff]
    %v601 = vld [vmem:[#allocation2 + $0x80] sm:$0xff]
    %603 = vset.pattern.permute.xlu0 0
    %604 = vperm.xlu0 %603, %v600
    %v605 = vpop.permute.xlu0 %604
    %608 = vset.pattern.permute.xlu0 0
    %609 = vperm.xlu0 %608, %v601
    %v610 = vpop.permute.xlu0 %609
    %v612 = vadd.f32 %v598, %v605
    %v613 = vadd.f32 %v599, %v610
    %v614 = vmax.f32 %v612, 0.0
    %v615 = vmax.f32 %v613, 0.0
    %616 = vrot.lane.b32.xlu0 %v614, 127
    %v617 = vpop.permute.xlu0 %616
    %618 = vrot.lane.b32.xlu0 %v615, 127
    %v619 = vpop.permute.xlu0 %618
    %v620 = vmax.f32 %v614, %v617
    %v621 = vmax.f32 %v615, %v619
    %v622 = vld [vmem:[#allocation2 + $0x88] sm:$0xff]
    %v623 = vld [vmem:[#allocation2 + $0x90] sm:$0xff]
    %v624 = vld [vmem:[#allocation2 + $0x98] sm:$0xff]
    %vm625 = vcmask 195584
    %v627 = vsel %vm625, %v620, 0
    %v630 = vsel %vm625, %v621, 0
    %632 = vmatprep.subr.mxu0 0.0
    %633 = vmatpush1.msra.mxu0 0.0
    %634 = vmatprep.subr.mxu0 0.0
    %635 = vmatpush1.msra.mxu0 0.0
    %636 = vmatprep.subr.mxu0 0.0
    %637 = vmatpush1.msra.mxu0 0.0
    %638 = vmatprep.subr.mxu0 0.0
    %639 = vmatpush1.msra.mxu0 0.0
    %640 = vmatprep.subr.mxu0 0.0
    %641 = vmatpush1.msra.mxu0 0.0
    %642 = vmatprep.subr.mxu0 0.0
    %643 = vmatpush1.msra.mxu0 0.0
    %644 = vmatprep.subr.mxu0 0.0
    %645 = vmatpush1.msra.mxu0 0.0
    %646 = vmatprep.subr.mxu0 0.0
    %647 = vmatpush1.msra.mxu0 0.0
    %648 = vmatprep.subr.mxu0 0.0
    %649 = vmatpush1.msra.mxu0 0.0
    %650 = vmatprep.subr.mxu0 0.0
    %651 = vmatpush1.msra.mxu0 0.0
    %652 = vmatprep.subr.mxu0 0.0
    %653 = vmatpush1.msra.mxu0 0.0
    %654 = vmatprep.subr.mxu0 0.0
    %655 = vmatpush1.msra.mxu0 0.0
    %656 = vmatprep.subr.mxu0 0.0
    %657 = vmatpush1.msra.mxu0 0.0
    %658 = vmatprep.subr.mxu0 0.0
    %659 = vmatpush1.msra.mxu0 %v624
    %660 = vmatprep.subr.mxu0 0.0
    %661 = vmatpush1.msra.mxu0 %v623
    %662 = vmatprep.subr.mxu0 0.0
    %663 = vmatpush1.msra.mxu0 %v622
    %664 = vmatprep.subr.mxu0 0.0
    %665 = vmatpush2.msra.mxu0 0.0
    %666 = vmatprep.subr.mxu0 0.0
    %667 = vmatpush2.msra.mxu0 0.0
    %668 = vmatprep.subr.mxu0 0.0
    %669 = vmatpush2.msra.mxu0 0.0
    %670 = vmatprep.subr.mxu0 0.0
    %671 = vmatpush2.msra.mxu0 0.0
    %672 = vmatprep.subr.mxu0 0.0
    %673 = vmatpush2.msra.mxu0 0.0
    %674 = vmatprep.subr.mxu0 0.0
    %675 = vmatpush2.msra.mxu0 0.0
    %676 = vmatprep.subr.mxu0 0.0
    %677 = vmatpush2.msra.mxu0 0.0
    %678 = vmatprep.subr.mxu0 0.0
    %679 = vmatpush2.msra.mxu0 0.0
    %680 = vmatprep.subr.mxu0 0.0
    %681 = vmatpush2.msra.mxu0 0.0
    %682 = vmatprep.subr.mxu0 0.0
    %683 = vmatpush2.msra.mxu0 0.0
    %684 = vmatprep.subr.mxu0 0.0
    %685 = vmatpush2.msra.mxu0 0.0
    %686 = vmatprep.subr.mxu0 0.0
    %687 = vmatpush2.msra.mxu0 0.0
    %688 = vmatprep.subr.mxu0 0.0
    %689 = vmatpush2.msra.mxu0 0.0
    %690 = vmatprep.subr.mxu0 0.0
    %691 = vmatpush2.msra.mxu0 0.0
    %692 = vmatprep.subr.mxu0 0.0
    %693 = vmatpush2.msra.mxu0 0.0
    %694 = vmatprep.subr.mxu0 0.0
    %695 = vmatpush2.msra.mxu0 0.0
    %696 = vmatprep.mubr.f32.mxu0 0.0
    %697 = vmatmul.mubr.f32.gmra.mxu0 %v627
    %v698 = vpop.f32.mrf.mxu0
    %v699 = vadd.f32 0.0, %v698
    %v700 = vpop.f32.mrf.mxu0
    %701 = vmatprep.mubr.f32.mxu0 0.0
    %702 = vmatmul.mubr.f32.gmra.mxu0 %v630
    %v703 = vpop.f32.mrf.mxu0
    %v704 = vadd.f32 0.0, %v703
    %v705 = vpop.f32.mrf.mxu0
    %706 = vdwg.mxu0
    %v707 = vld [vmem:[#allocation2 + $0xa0] sm:$0xff]
    %v708 = vld [vmem:[#allocation2 + $0xa8] sm:$0xff]
    %v709 = vld [vmem:[#allocation2 + $0xb0] sm:$0xff]
    %v710 = vld [vmem:[#allocation2 + $0xb8] sm:$0xff]
    %v711 = vld [vmem:[#allocation2 + $0xc0] sm:$0xff]
    %v712 = vld [vmem:[#allocation2 + $0xc8] sm:$0xff]
    %v713 = vld [vmem:[#allocation2 + $0xd0] sm:$0xff]
    %v714 = vld [vmem:[#allocation2 + $0xd8] sm:$0xff]
    %717 = vrot.lane.b32.xlu0 %v699, 126
    %v718 = vpop.permute.xlu0 %717
    %719 = vrot.lane.b32.xlu0 %v704, 126
    %v720 = vpop.permute.xlu0 %719
    %vm723 = vcmask 130048
    %v725 = vsel %vm723, %v711, 0
    %v728 = vsel %vm723, %v712, 0
    %v731 = vsel %vm723, %v713, 0
    %v734 = vsel %vm723, %v714, 0
    %736 = vmatprep.subr.mxu0 0.0
    %737 = vmatpush1.msra.mxu0 0.0
    %738 = vmatprep.subr.mxu0 0.0
    %739 = vmatpush1.msra.mxu0 0.0
    %740 = vmatprep.subr.mxu0 0.0
    %741 = vmatpush1.msra.mxu0 0.0
    %742 = vmatprep.subr.mxu0 0.0
    %743 = vmatpush1.msra.mxu0 0.0
    %744 = vmatprep.subr.mxu0 0.0
    %745 = vmatpush1.msra.mxu0 0.0
    %746 = vmatprep.subr.mxu0 0.0
    %747 = vmatpush1.msra.mxu0 0.0
    %748 = vmatprep.subr.mxu0 0.0
    %749 = vmatpush1.msra.mxu0 0.0
    %750 = vmatprep.subr.mxu0 0.0
    %751 = vmatpush1.msra.mxu0 0.0
    %752 = vmatprep.subr.mxu0 0.0
    %753 = vmatpush1.msra.mxu0 0.0
    %754 = vmatprep.subr.mxu0 0.0
    %755 = vmatpush1.msra.mxu0 0.0
    %756 = vmatprep.subr.mxu0 0.0
    %757 = vmatpush1.msra.mxu0 0.0
    %758 = vmatprep.subr.mxu0 0.0
    %759 = vmatpush1.msra.mxu0 0.0
    %760 = vmatprep.subr.mxu0 0.0
    %761 = vmatpush1.msra.mxu0 0.0
    %762 = vmatprep.subr.mxu0 0.0
    %763 = vmatpush1.msra.mxu0 0.0
    %764 = vmatprep.subr.mxu0 0.0
    %765 = vmatpush1.msra.mxu0 %v720
    %766 = vmatprep.subr.mxu0 0.0
    %767 = vmatpush1.msra.mxu0 %v718
    %768 = vmatprep.subr.mxu0 0.0
    %769 = vmatpush2.msra.mxu0 0.0
    %770 = vmatprep.subr.mxu0 0.0
    %771 = vmatpush2.msra.mxu0 0.0
    %772 = vmatprep.subr.mxu0 0.0
    %773 = vmatpush2.msra.mxu0 0.0
    %774 = vmatprep.subr.mxu0 0.0
    %775 = vmatpush2.msra.mxu0 0.0
    %776 = vmatprep.subr.mxu0 0.0
    %777 = vmatpush2.msra.mxu0 0.0
    %778 = vmatprep.subr.mxu0 0.0
    %779 = vmatpush2.msra.mxu0 0.0
    %780 = vmatprep.subr.mxu0 0.0
    %781 = vmatpush2.msra.mxu0 0.0
    %782 = vmatprep.subr.mxu0 0.0
    %783 = vmatpush2.msra.mxu0 0.0
    %784 = vmatprep.subr.mxu0 0.0
    %785 = vmatpush2.msra.mxu0 0.0
    %786 = vmatprep.subr.mxu0 0.0
    %787 = vmatpush2.msra.mxu0 0.0
    %788 = vmatprep.subr.mxu0 0.0
    %789 = vmatpush2.msra.mxu0 0.0
    %790 = vmatprep.subr.mxu0 0.0
    %791 = vmatpush2.msra.mxu0 0.0
    %792 = vmatprep.subr.mxu0 0.0
    %793 = vmatpush2.msra.mxu0 0.0
    %794 = vmatprep.subr.mxu0 0.0
    %795 = vmatpush2.msra.mxu0 0.0
    %796 = vmatprep.subr.mxu0 0.0
    %797 = vmatpush2.msra.mxu0 0.0
    %798 = vmatprep.subr.mxu0 0.0
    %799 = vmatpush2.msra.mxu0 0.0
    %800 = vmatprep.mubr.f32.mxu0 0.0
    %801 = vmatmul.mubr.f32.gmra.mxu0 %v725
    %v802 = vpop.f32.mrf.mxu0
    %v803 = vadd.f32 0.0, %v802
    %v804 = vpop.f32.mrf.mxu0
    %805 = vmatprep.mubr.f32.mxu0 0.0
    %806 = vmatmul.mubr.f32.gmra.mxu0 %v728
    %v807 = vpop.f32.mrf.mxu0
    %v808 = vadd.f32 0.0, %v807
    %v809 = vpop.f32.mrf.mxu0
    %810 = vmatprep.mubr.f32.mxu0 0.0
    %811 = vmatmul.mubr.f32.gmra.mxu0 %v731
    %v812 = vpop.f32.mrf.mxu0
    %v813 = vadd.f32 0.0, %v812
    %v814 = vpop.f32.mrf.mxu0
    %815 = vmatprep.mubr.f32.mxu0 0.0
    %816 = vmatmul.mubr.f32.gmra.mxu0 %v734
    %v817 = vpop.f32.mrf.mxu0
    %v818 = vadd.f32 0.0, %v817
    %v819 = vpop.f32.mrf.mxu0
    %820 = vdwg.mxu0
    %v822 = vsel %vm723, %v707, 0
    %v825 = vsel %vm723, %v708, 0
    %v828 = vsel %vm723, %v709, 0
    %v831 = vsel %vm723, %v710, 0
    %833 = vmatprep.subr.mxu0 0.0
    %834 = vmatpush1.msra.mxu0 0.0
    %835 = vmatprep.subr.mxu0 0.0
    %836 = vmatpush1.msra.mxu0 0.0
    %837 = vmatprep.subr.mxu0 0.0
    %838 = vmatpush1.msra.mxu0 0.0
    %839 = vmatprep.subr.mxu0 0.0
    %840 = vmatpush1.msra.mxu0 0.0
    %841 = vmatprep.subr.mxu0 0.0
    %842 = vmatpush1.msra.mxu0 0.0
    %843 = vmatprep.subr.mxu0 0.0
    %844 = vmatpush1.msra.mxu0 0.0
    %845 = vmatprep.subr.mxu0 0.0
    %846 = vmatpush1.msra.mxu0 0.0
    %847 = vmatprep.subr.mxu0 0.0
    %848 = vmatpush1.msra.mxu0 0.0
    %849 = vmatprep.subr.mxu0 0.0
    %850 = vmatpush1.msra.mxu0 0.0
    %851 = vmatprep.subr.mxu0 0.0
    %852 = vmatpush1.msra.mxu0 0.0
    %853 = vmatprep.subr.mxu0 0.0
    %854 = vmatpush1.msra.mxu0 0.0
    %855 = vmatprep.subr.mxu0 0.0
    %856 = vmatpush1.msra.mxu0 0.0
    %857 = vmatprep.subr.mxu0 0.0
    %858 = vmatpush1.msra.mxu0 0.0
    %859 = vmatprep.subr.mxu0 0.0
    %860 = vmatpush1.msra.mxu0 0.0
    %861 = vmatprep.subr.mxu0 0.0
    %862 = vmatpush1.msra.mxu0 %v704
    %863 = vmatprep.subr.mxu0 0.0
    %864 = vmatpush1.msra.mxu0 %v699
    %865 = vmatprep.subr.mxu0 0.0
    %866 = vmatpush2.msra.mxu0 0.0
    %867 = vmatprep.subr.mxu0 0.0
    %868 = vmatpush2.msra.mxu0 0.0
    %869 = vmatprep.subr.mxu0 0.0
    %870 = vmatpush2.msra.mxu0 0.0
    %871 = vmatprep.subr.mxu0 0.0
    %872 = vmatpush2.msra.mxu0 0.0
    %873 = vmatprep.subr.mxu0 0.0
    %874 = vmatpush2.msra.mxu0 0.0
    %875 = vmatprep.subr.mxu0 0.0
    %876 = vmatpush2.msra.mxu0 0.0
    %877 = vmatprep.subr.mxu0 0.0
    %878 = vmatpush2.msra.mxu0 0.0
    %879 = vmatprep.subr.mxu0 0.0
    %880 = vmatpush2.msra.mxu0 0.0
    %881 = vmatprep.subr.mxu0 0.0
    %882 = vmatpush2.msra.mxu0 0.0
    %883 = vmatprep.subr.mxu0 0.0
    %884 = vmatpush2.msra.mxu0 0.0
    %885 = vmatprep.subr.mxu0 0.0
    %886 = vmatpush2.msra.mxu0 0.0
    %887 = vmatprep.subr.mxu0 0.0
    %888 = vmatpush2.msra.mxu0 0.0
    %889 = vmatprep.subr.mxu0 0.0
    %890 = vmatpush2.msra.mxu0 0.0
    %891 = vmatprep.subr.mxu0 0.0
    %892 = vmatpush2.msra.mxu0 0.0
    %893 = vmatprep.subr.mxu0 0.0
    %894 = vmatpush2.msra.mxu0 0.0
    %895 = vmatprep.subr.mxu0 0.0
    %896 = vmatpush2.msra.mxu0 0.0
    %897 = vmatprep.mubr.f32.mxu0 0.0
    %898 = vmatmul.mubr.f32.gmra.mxu0 %v822
    %v899 = vpop.f32.mrf.mxu0
    %v900 = vadd.f32 %v803, %v899
    %v901 = vpop.f32.mrf.mxu0
    %902 = vmatprep.mubr.f32.mxu0 0.0
    %903 = vmatmul.mubr.f32.gmra.mxu0 %v825
    %v904 = vpop.f32.mrf.mxu0
    %v905 = vadd.f32 %v808, %v904
    %v906 = vpop.f32.mrf.mxu0
    %907 = vmatprep.mubr.f32.mxu0 0.0
    %908 = vmatmul.mubr.f32.gmra.mxu0 %v828
    %v909 = vpop.f32.mrf.mxu0
    %v910 = vadd.f32 %v813, %v909
    %v911 = vpop.f32.mrf.mxu0
    %912 = vmatprep.mubr.f32.mxu0 0.0
    %913 = vmatmul.mubr.f32.gmra.mxu0 %v831
    %v914 = vpop.f32.mrf.mxu0
    %v915 = vadd.f32 %v818, %v914
    %v916 = vpop.f32.mrf.mxu0
    %917 = vdwg.mxu0
    %v918 = vld [vmem:[#allocation2 + $0xe0] sm:$0xff]
    %v919 = vld [vmem:[#allocation2 + $0xe8] sm:$0xff]
    %v920 = vld [vmem:[#allocation2 + $0xf0] sm:$0xff]
    %v921 = vld [vmem:[#allocation2 + $0xf8] sm:$0xff]
    %922 = vrot.lane.b32.xlu0 %v699, 124
    %v923 = vpop.permute.xlu0 %922
    %924 = vrot.lane.b32.xlu0 %v704, 124
    %v925 = vpop.permute.xlu0 %924
    %v929 = vsel %vm723, %v918, 0
    %v932 = vsel %vm723, %v919, 0
    %v935 = vsel %vm723, %v920, 0
    %v938 = vsel %vm723, %v921, 0
    %940 = vmatprep.subr.mxu0 0.0
    %941 = vmatpush1.msra.mxu0 0.0
    %942 = vmatprep.subr.mxu0 0.0
    %943 = vmatpush1.msra.mxu0 0.0
    %944 = vmatprep.subr.mxu0 0.0
    %945 = vmatpush1.msra.mxu0 0.0
    %946 = vmatprep.subr.mxu0 0.0
    %947 = vmatpush1.msra.mxu0 0.0
    %948 = vmatprep.subr.mxu0 0.0
    %949 = vmatpush1.msra.mxu0 0.0
    %950 = vmatprep.subr.mxu0 0.0
    %951 = vmatpush1.msra.mxu0 0.0
    %952 = vmatprep.subr.mxu0 0.0
    %953 = vmatpush1.msra.mxu0 0.0
    %954 = vmatprep.subr.mxu0 0.0
    %955 = vmatpush1.msra.mxu0 0.0
    %956 = vmatprep.subr.mxu0 0.0
    %957 = vmatpush1.msra.mxu0 0.0
    %958 = vmatprep.subr.mxu0 0.0
    %959 = vmatpush1.msra.mxu0 0.0
    %960 = vmatprep.subr.mxu0 0.0
    %961 = vmatpush1.msra.mxu0 0.0
    %962 = vmatprep.subr.mxu0 0.0
    %963 = vmatpush1.msra.mxu0 0.0
    %964 = vmatprep.subr.mxu0 0.0
    %965 = vmatpush1.msra.mxu0 0.0
    %966 = vmatprep.subr.mxu0 0.0
    %967 = vmatpush1.msra.mxu0 0.0
    %968 = vmatprep.subr.mxu0 0.0
    %969 = vmatpush1.msra.mxu0 %v925
    %970 = vmatprep.subr.mxu0 0.0
    %971 = vmatpush1.msra.mxu0 %v923
    %972 = vmatprep.subr.mxu0 0.0
    %973 = vmatpush2.msra.mxu0 0.0
    %974 = vmatprep.subr.mxu0 0.0
    %975 = vmatpush2.msra.mxu0 0.0
    %976 = vmatprep.subr.mxu0 0.0
    %977 = vmatpush2.msra.mxu0 0.0
    %978 = vmatprep.subr.mxu0 0.0
    %979 = vmatpush2.msra.mxu0 0.0
    %980 = vmatprep.subr.mxu0 0.0
    %981 = vmatpush2.msra.mxu0 0.0
    %982 = vmatprep.subr.mxu0 0.0
    %983 = vmatpush2.msra.mxu0 0.0
    %984 = vmatprep.subr.mxu0 0.0
    %985 = vmatpush2.msra.mxu0 0.0
    %986 = vmatprep.subr.mxu0 0.0
    %987 = vmatpush2.msra.mxu0 0.0
    %988 = vmatprep.subr.mxu0 0.0
    %989 = vmatpush2.msra.mxu0 0.0
    %990 = vmatprep.subr.mxu0 0.0
    %991 = vmatpush2.msra.mxu0 0.0
    %992 = vmatprep.subr.mxu0 0.0
    %993 = vmatpush2.msra.mxu0 0.0
    %994 = vmatprep.subr.mxu0 0.0
    %995 = vmatpush2.msra.mxu0 0.0
    %996 = vmatprep.subr.mxu0 0.0
    %997 = vmatpush2.msra.mxu0 0.0
    %998 = vmatprep.subr.mxu0 0.0
    %999 = vmatpush2.msra.mxu0 0.0
    %1000 = vmatprep.subr.mxu0 0.0
    %1001 = vmatpush2.msra.mxu0 0.0
    %1002 = vmatprep.subr.mxu0 0.0
    %1003 = vmatpush2.msra.mxu0 0.0
    %1004 = vmatprep.mubr.f32.mxu0 0.0
    %1005 = vmatmul.mubr.f32.gmra.mxu0 %v929
    %v1006 = vpop.f32.mrf.mxu0
    %v1007 = vadd.f32 0.0, %v1006
    %v1008 = vpop.f32.mrf.mxu0
    %1009 = vmatprep.mubr.f32.mxu0 0.0
    %1010 = vmatmul.mubr.f32.gmra.mxu0 %v932
    %v1011 = vpop.f32.mrf.mxu0
    %v1012 = vadd.f32 0.0, %v1011
    %v1013 = vpop.f32.mrf.mxu0
    %1014 = vmatprep.mubr.f32.mxu0 0.0
    %1015 = vmatmul.mubr.f32.gmra.mxu0 %v935
    %v1016 = vpop.f32.mrf.mxu0
    %v1017 = vadd.f32 0.0, %v1016
    %v1018 = vpop.f32.mrf.mxu0
    %1019 = vmatprep.mubr.f32.mxu0 0.0
    %1020 = vmatmul.mubr.f32.gmra.mxu0 %v938
    %v1021 = vpop.f32.mrf.mxu0
    %v1022 = vadd.f32 0.0, %v1021
    %v1023 = vpop.f32.mrf.mxu0
    %1024 = vdwg.mxu0
    %v1025 = vadd.f32 %v900, %v1007
    %v1026 = vadd.f32 %v905, %v1012
    %v1027 = vadd.f32 %v910, %v1017
    %v1028 = vadd.f32 %v915, %v1022
    %v1029 = vld [vmem:[#allocation2 + $0x100] sm:$0xff]
    %v1030 = vld [vmem:[#allocation2 + $0x108] sm:$0xff]
    %v1031 = vld [vmem:[#allocation2 + $0x110] sm:$0xff]
    %v1032 = vld [vmem:[#allocation2 + $0x118] sm:$0xff]
    %1033 = vrot.lane.b32.xlu0 %v699, 122
    %v1034 = vpop.permute.xlu0 %1033
    %1035 = vrot.lane.b32.xlu0 %v704, 122
    %v1036 = vpop.permute.xlu0 %1035
    %v1040 = vsel %vm723, %v1029, 0
    %v1043 = vsel %vm723, %v1030, 0
    %v1046 = vsel %vm723, %v1031, 0
    %v1049 = vsel %vm723, %v1032, 0
    %1051 = vmatprep.subr.mxu0 0.0
    %1052 = vmatpush1.msra.mxu0 0.0
    %1053 = vmatprep.subr.mxu0 0.0
    %1054 = vmatpush1.msra.mxu0 0.0
    %1055 = vmatprep.subr.mxu0 0.0
    %1056 = vmatpush1.msra.mxu0 0.0
    %1057 = vmatprep.subr.mxu0 0.0
    %1058 = vmatpush1.msra.mxu0 0.0
    %1059 = vmatprep.subr.mxu0 0.0
    %1060 = vmatpush1.msra.mxu0 0.0
    %1061 = vmatprep.subr.mxu0 0.0
    %1062 = vmatpush1.msra.mxu0 0.0
    %1063 = vmatprep.subr.mxu0 0.0
    %1064 = vmatpush1.msra.mxu0 0.0
    %1065 = vmatprep.subr.mxu0 0.0
    %1066 = vmatpush1.msra.mxu0 0.0
    %1067 = vmatprep.subr.mxu0 0.0
    %1068 = vmatpush1.msra.mxu0 0.0
    %1069 = vmatprep.subr.mxu0 0.0
    %1070 = vmatpush1.msra.mxu0 0.0
    %1071 = vmatprep.subr.mxu0 0.0
    %1072 = vmatpush1.msra.mxu0 0.0
    %1073 = vmatprep.subr.mxu0 0.0
    %1074 = vmatpush1.msra.mxu0 0.0
    %1075 = vmatprep.subr.mxu0 0.0
    %1076 = vmatpush1.msra.mxu0 0.0
    %1077 = vmatprep.subr.mxu0 0.0
    %1078 = vmatpush1.msra.mxu0 0.0
    %1079 = vmatprep.subr.mxu0 0.0
    %1080 = vmatpush1.msra.mxu0 %v1036
    %1081 = vmatprep.subr.mxu0 0.0
    %1082 = vmatpush1.msra.mxu0 %v1034
    %1083 = vmatprep.subr.mxu0 0.0
    %1084 = vmatpush2.msra.mxu0 0.0
    %1085 = vmatprep.subr.mxu0 0.0
    %1086 = vmatpush2.msra.mxu0 0.0
    %1087 = vmatprep.subr.mxu0 0.0
    %1088 = vmatpush2.msra.mxu0 0.0
    %1089 = vmatprep.subr.mxu0 0.0
    %1090 = vmatpush2.msra.mxu0 0.0
    %1091 = vmatprep.subr.mxu0 0.0
    %1092 = vmatpush2.msra.mxu0 0.0
    %1093 = vmatprep.subr.mxu0 0.0
    %1094 = vmatpush2.msra.mxu0 0.0
    %1095 = vmatprep.subr.mxu0 0.0
    %1096 = vmatpush2.msra.mxu0 0.0
    %1097 = vmatprep.subr.mxu0 0.0
    %1098 = vmatpush2.msra.mxu0 0.0
    %1099 = vmatprep.subr.mxu0 0.0
    %1100 = vmatpush2.msra.mxu0 0.0
    %1101 = vmatprep.subr.mxu0 0.0
    %1102 = vmatpush2.msra.mxu0 0.0
    %1103 = vmatprep.subr.mxu0 0.0
    %1104 = vmatpush2.msra.mxu0 0.0
    %1105 = vmatprep.subr.mxu0 0.0
    %1106 = vmatpush2.msra.mxu0 0.0
    %1107 = vmatprep.subr.mxu0 0.0
    %1108 = vmatpush2.msra.mxu0 0.0
    %1109 = vmatprep.subr.mxu0 0.0
    %1110 = vmatpush2.msra.mxu0 0.0
    %1111 = vmatprep.subr.mxu0 0.0
    %1112 = vmatpush2.msra.mxu0 0.0
    %1113 = vmatprep.subr.mxu0 0.0
    %1114 = vmatpush2.msra.mxu0 0.0
    %1115 = vmatprep.mubr.f32.mxu0 0.0
    %1116 = vmatmul.mubr.f32.gmra.mxu0 %v1040
    %v1117 = vpop.f32.mrf.mxu0
    %v1118 = vadd.f32 0.0, %v1117
    %v1119 = vpop.f32.mrf.mxu0
    %1120 = vmatprep.mubr.f32.mxu0 0.0
    %1121 = vmatmul.mubr.f32.gmra.mxu0 %v1043
    %v1122 = vpop.f32.mrf.mxu0
    %v1123 = vadd.f32 0.0, %v1122
    %v1124 = vpop.f32.mrf.mxu0
    %1125 = vmatprep.mubr.f32.mxu0 0.0
    %1126 = vmatmul.mubr.f32.gmra.mxu0 %v1046
    %v1127 = vpop.f32.mrf.mxu0
    %v1128 = vadd.f32 0.0, %v1127
    %v1129 = vpop.f32.mrf.mxu0
    %1130 = vmatprep.mubr.f32.mxu0 0.0
    %1131 = vmatmul.mubr.f32.gmra.mxu0 %v1049
    %v1132 = vpop.f32.mrf.mxu0
    %v1133 = vadd.f32 0.0, %v1132
    %v1134 = vpop.f32.mrf.mxu0
    %1135 = vdwg.mxu0
    %v1136 = vadd.f32 %v1025, %v1118
    %v1137 = vadd.f32 %v1026, %v1123
    %v1138 = vadd.f32 %v1027, %v1128
    %v1139 = vadd.f32 %v1028, %v1133
    %v1140 = vld [vmem:[#allocation2 + $0x120] sm:$0xff]
    %v1141 = vld [vmem:[#allocation2 + $0x128] sm:$0xff]
    %v1142 = vld [vmem:[#allocation2 + $0x130] sm:$0xff]
    %v1143 = vld [vmem:[#allocation2 + $0x138] sm:$0xff]
    %1145 = vset.pattern.permute.xlu0 0
    %1146 = vperm.xlu0 %1145, %v1140
    %v1147 = vpop.permute.xlu0 %1146
    %1150 = vset.pattern.permute.xlu0 0
    %1151 = vperm.xlu0 %1150, %v1141
    %v1152 = vpop.permute.xlu0 %1151
    %1155 = vset.pattern.permute.xlu0 0
    %1156 = vperm.xlu0 %1155, %v1142
    %v1157 = vpop.permute.xlu0 %1156
    %1160 = vset.pattern.permute.xlu0 0
    %1161 = vperm.xlu0 %1160, %v1143
    %v1162 = vpop.permute.xlu0 %1161
    %v1164 = vadd.f32 %v1136, %v1147
    %v1165 = vadd.f32 %v1137, %v1152
    %v1166 = vadd.f32 %v1138, %v1157
    %v1167 = vadd.f32 %v1139, %v1162
    %v1168 = vmax.f32 %v1164, 0.0
    %v1169 = vmax.f32 %v1165, 0.0
    %v1170 = vmax.f32 %v1166, 0.0
    %v1171 = vmax.f32 %v1167, 0.0
    %v1172 = vld [vmem:[#allocation2 + $0x140] sm:$0xff]
    %v1173 = vld [vmem:[#allocation2 + $0x148] sm:$0xff]
    %v1174 = vld [vmem:[#allocation2 + $0x150] sm:$0xff]
    %v1175 = vld [vmem:[#allocation2 + $0x158] sm:$0xff]
    %1177 = vset.pattern.permute.xlu0 0
    %1178 = vperm.xlu0 %1177, %v1174
    %v1179 = vpop.permute.xlu0 %1178
    %1182 = vset.pattern.permute.xlu0 0
    %1183 = vperm.xlu0 %1182, %v1175
    %v1184 = vpop.permute.xlu0 %1183
    %vm1186 = vcmask 261120
    %v1188 = vsel %vm1186, %v1172, 0
    %v1191 = vsel %vm1186, %v1173, 0
    %1193 = vmatprep.subr.mxu0 0.0
    %1194 = vmatpush1.msra.mxu0 0.0
    %1195 = vmatprep.subr.mxu0 0.0
    %1196 = vmatpush1.msra.mxu0 0.0
    %1197 = vmatprep.subr.mxu0 0.0
    %1198 = vmatpush1.msra.mxu0 0.0
    %1199 = vmatprep.subr.mxu0 0.0
    %1200 = vmatpush1.msra.mxu0 0.0
    %1201 = vmatprep.subr.mxu0 0.0
    %1202 = vmatpush1.msra.mxu0 0.0
    %1203 = vmatprep.subr.mxu0 0.0
    %1204 = vmatpush1.msra.mxu0 0.0
    %1205 = vmatprep.subr.mxu0 0.0
    %1206 = vmatpush1.msra.mxu0 0.0
    %1207 = vmatprep.subr.mxu0 0.0
    %1208 = vmatpush1.msra.mxu0 0.0
    %1209 = vmatprep.subr.mxu0 0.0
    %1210 = vmatpush1.msra.mxu0 0.0
    %1211 = vmatprep.subr.mxu0 0.0
    %1212 = vmatpush1.msra.mxu0 0.0
    %1213 = vmatprep.subr.mxu0 0.0
    %1214 = vmatpush1.msra.mxu0 0.0
    %1215 = vmatprep.subr.mxu0 0.0
    %1216 = vmatpush1.msra.mxu0 0.0
    %1217 = vmatprep.subr.mxu0 0.0
    %1218 = vmatpush1.msra.mxu0 %v1171
    %1219 = vmatprep.subr.mxu0 0.0
    %1220 = vmatpush1.msra.mxu0 %v1170
    %1221 = vmatprep.subr.mxu0 0.0
    %1222 = vmatpush1.msra.mxu0 %v1169
    %1223 = vmatprep.subr.mxu0 0.0
    %1224 = vmatpush1.msra.mxu0 %v1168
    %1225 = vmatprep.subr.mxu0 0.0
    %1226 = vmatpush2.msra.mxu0 0.0
    %1227 = vmatprep.subr.mxu0 0.0
    %1228 = vmatpush2.msra.mxu0 0.0
    %1229 = vmatprep.subr.mxu0 0.0
    %1230 = vmatpush2.msra.mxu0 0.0
    %1231 = vmatprep.subr.mxu0 0.0
    %1232 = vmatpush2.msra.mxu0 0.0
    %1233 = vmatprep.subr.mxu0 0.0
    %1234 = vmatpush2.msra.mxu0 0.0
    %1235 = vmatprep.subr.mxu0 0.0
    %1236 = vmatpush2.msra.mxu0 0.0
    %1237 = vmatprep.subr.mxu0 0.0
    %1238 = vmatpush2.msra.mxu0 0.0
    %1239 = vmatprep.subr.mxu0 0.0
    %1240 = vmatpush2.msra.mxu0 0.0
    %1241 = vmatprep.subr.mxu0 0.0
    %1242 = vmatpush2.msra.mxu0 0.0
    %1243 = vmatprep.subr.mxu0 0.0
    %1244 = vmatpush2.msra.mxu0 0.0
    %1245 = vmatprep.subr.mxu0 0.0
    %1246 = vmatpush2.msra.mxu0 0.0
    %1247 = vmatprep.subr.mxu0 0.0
    %1248 = vmatpush2.msra.mxu0 0.0
    %1249 = vmatprep.subr.mxu0 0.0
    %1250 = vmatpush2.msra.mxu0 0.0
    %1251 = vmatprep.subr.mxu0 0.0
    %1252 = vmatpush2.msra.mxu0 0.0
    %1253 = vmatprep.subr.mxu0 0.0
    %1254 = vmatpush2.msra.mxu0 0.0
    %1255 = vmatprep.subr.mxu0 0.0
    %1256 = vmatpush2.msra.mxu0 0.0
    %1257 = vmatprep.mubr.f32.mxu0 0.0
    %1258 = vmatmul.mubr.f32.gmra.mxu0 %v1188
    %v1259 = vpop.f32.mrf.mxu0
    %v1260 = vadd.f32 %v1179, %v1259
    %v1261 = vpop.f32.mrf.mxu0
    %1262 = vmatprep.mubr.f32.mxu0 0.0
    %1263 = vmatmul.mubr.f32.gmra.mxu0 %v1191
    %v1264 = vpop.f32.mrf.mxu0
    %v1265 = vadd.f32 %v1184, %v1264
    %v1266 = vpop.f32.mrf.mxu0
    %1267 = vdwg.mxu0
    %v1268 = vmax.f32 %v1260, 0.0
    %v1269 = vmax.f32 %v1265, 0.0
    %v1270 = vld [vmem:[#allocation2 + $0x160] sm:$0xff]
    %v1271 = vld [vmem:[#allocation2 + $0x168] sm:$0xff]
    %1273 = vset.pattern.permute.xlu0 0
    %1274 = vperm.xlu0 %1273, %v1270
    %v1275 = vpop.permute.xlu0 %1274
    %1278 = vset.pattern.permute.xlu0 0
    %1279 = vperm.xlu0 %1278, %v1271
    %v1280 = vpop.permute.xlu0 %1279
    %v1282 = vmul.f32 %v1268, %v1275
    %v1283 = vmul.f32 %v1269, %v1280
    %vm1284 = vcmask 15360
    %v1285 = vsel %vm1284, %v1282, 0.0
    %v1286 = vsel %vm1284, %v1283, 0.0
    %v1287 = vadd.f32 %v1285, %v1286
    %v1288 = vrot.slane %v1287, 4
    %v1289 = vadd.f32 %v1287, %v1288
    %v1290 = vrot.slane %v1289, 2
    %v1291 = vadd.f32 %v1289, %v1290
    %v1292 = vrot.slane %v1291, 1
    %v1293 = vadd.f32 %v1291, %v1292
    %v1294 = vld [vmem:[#allocation2 + $0x170] sm:$0x1]
    %1296 = vset.pattern.permute.xlu0 0
    %1297 = vperm.xlu0 %1296, %v1294
    %v1298 = vpop.permute.xlu0 %1297
    %v1300 = vadd.f32 %v1293, %v1298
    %vm1301 = vcmask 8192
    %1302 = vst.msk [vmem:[#allocation5] sm:$0x1] %vm1301, %v1300
    // Predicated region
    $region14: #{deep_conv_net_forward.1} parent=1 // pred_check
      _
    $region15: #{deep_conv_net_forward.1} parent=1 // pred_check_branch
      %1304 = sbr.rel (0) target = $region17
    $region16: #{deep_conv_net_forward.1} parent=1 // pred_region
      %s1306 = ssub.s32 16, 16
      %1307 = vsyncadd [#allocation4], %s1306
      %s1309 = sshll.u32 [#allocation5], 4
      %s1310 = int_to_ptr.vmem [resolvable:$true] %s1309
      %1312 = dma.vmem_to_hbm [thread:$0]  %s1310, 16, %s2, [#allocation4]
    $region17: #{deep_conv_net_forward.1} parent=1 // pred_fallthru
      _
    // Predicated region
    $region18: #{deep_conv_net_forward.1} parent=1 // pred_check
      _
    $region19: #{deep_conv_net_forward.1} parent=1 // pred_check_branch
      %1314 = sbr.rel (0) target = $region21
    $region20: #{deep_conv_net_forward.1} parent=1 // pred_region
      %1315 = dma.done [#allocation4], 16
    $region21: #{deep_conv_net_forward.1} parent=1 // pred_fallthru
      _
    %1316 = vsyncpa [#allocation3], 1
    %1317 = vsyncpa [#allocation4], 1

</llo_original>
